<compile_context>
chip_gen: v7x
topology: tpu7x:2x2x1
jax: 0.10.0
libtpu: 0.0.40
codegen_flags: <defaults>
</compile_context>

<pallas_src>
import jax
import jax.numpy as jnp
import numpy as np
from jax import lax
from jax.experimental import pallas as pl
from jax.experimental.pallas import tpu as pltpu


# ---------------------------------------------------------------------------
# Pallas kernel: fused UpBlock conv (merged skip+up branches) + GroupNorm(1) + ReLU
# ---------------------------------------------------------------------------
def _upblock_kernel(m_ref, b_ref, aux_ref, o_ref):
    # m_ref  : (1, H+2, K)        conv-padded, lane-packed conv input.
    #          Row r = concat(skip_pad[r], up_pad[r+1]); K = (W+2)*Cs + (W//2+2)*Cu.
    # b_ref  : (3, K, W*Cout)     banded conv weights: dx taps AND the nearest-2x
    #          column upsample folded into the band; skip rows stacked above up rows.
    # aux_ref: (3, W*Cout) f32    rows = conv bias, gamma, beta (tiled over W).
    # o_ref  : (1, H, W*Cout)     bf16 for intermediate blocks, f32 for the last.
    H = o_ref.shape[1]

    acc = jnp.zeros(o_ref.shape[1:], jnp.float32)             # (H, W*Cout) lane-dense
    for dy in range(3):                                        # static unroll: 3 MXU matmuls
        acc = acc + jnp.dot(m_ref[0, pl.ds(dy, H), :], b_ref[dy],
                            preferred_element_type=jnp.float32)
    # TODO(synk): on v6e/v7x the MXU is 256 lanes wide; packing two dy weight
    # blocks side-by-side as (K, 256) would double per-push utilization but
    # requires a sublane-misaligned shifted-row add — skipped at these shapes.

    aux = aux_ref[...]
    acc = acc + aux[0:1, :]                                    # conv bias

    # norm='ln' taken as GroupNorm(num_groups=1): statistics over all (C,H,W)
    # of the sample.  Two-pass (mean, then centered variance) to avoid the
    # E[x^2]-E[x]^2 cancellation; lane partials first, then the tiny (H,1) tail.
    # TODO(synk): get_norm_layer('ln') source unavailable; GroupNorm(1, C) assumed.
    inv_n = 1.0 / float(acc.size)
    mean = jnp.sum(jnp.sum(acc, axis=-1, keepdims=True)) * inv_n
    cent = acc - mean
    var = jnp.sum(jnp.sum(cent * cent, axis=-1, keepdims=True)) * inv_n
    inv = lax.rsqrt(var + 1e-5)

    y = cent * (inv * aux[1:2, :]) + aux[2:3, :]
    o_ref[0] = jnp.maximum(y, 0.0).astype(o_ref.dtype)         # activation='relu'


def _upblock_conv(merged, Bw, aux, H, Wc, out_dtype):
    N = merged.shape[0]
    # grid=(N,) "parallel": N=2 feeds both v7x TensorCores; on single-TC
    # v5e/v6e these are two cheap serial steps.
    return pl.pallas_call(
        _upblock_kernel,
        out_shape=jax.ShapeDtypeStruct((N, H, Wc), out_dtype),
        grid=(N,),
        in_specs=[
            pl.BlockSpec((1,) + merged.shape[1:], lambda n: (n, 0, 0)),
            pl.BlockSpec(Bw.shape, lambda n: (0, 0, 0)),
            pl.BlockSpec(aux.shape, lambda n: (0, 0)),
        ],
        out_specs=pl.BlockSpec((1, H, Wc), lambda n: (n, 0, 0)),
        compiler_params=pltpu.CompilerParams(
            dimension_semantics=("parallel",),
            vmem_limit_bytes=32 * 1024 * 1024),
    )(merged, Bw, aux)


# ---------------------------------------------------------------------------
# Banded weight construction — runs ONCE per block at init, never in the forward
# ---------------------------------------------------------------------------
def _build_banded_weights(w, c_skip, W):
    # w: (3, 3, Cin, Cout) HWIO; channels [0:c_skip] = skip, [c_skip:] = up(x).
    # Bs[dy][(X+dx)*Cs + ci, X*Cout + co]          = w_skip[dy, dx, ci, co]
    # Bu[dy][((X+dx+1)//2)*Cu + ci, X*Cout + co]  += w_up  [dy, dx, ci, co]
    #   (the //2 mapping implements the nearest-2x *column* upsample).
    # Returned stacked along K: (3, (W+2)*Cs + (W//2+2)*Cu, W*Cout).
    _, _, Cin, Cout = w.shape
    Cu = Cin - c_skip
    wlo = W // 2
    ws = w[:, :, :c_skip, :]                    # (3,3,Cs,Cout)
    wu = w[:, :, c_skip:, :]                    # (3,3,Cu,Cout)

    X = jnp.arange(W)
    Bs = jnp.zeros((3, W + 2, c_skip, W, Cout), jnp.float32)
    Bu = jnp.zeros((3, wlo + 2, Cu, W, Cout), jnp.float32)
    for dx in range(3):
        Es = jnp.eye(W + 2, W, k=-dx, dtype=jnp.float32)              # [X+dx, X] = 1
        Bs = Bs + Es[None, :, None, :, None] * ws[:, dx][:, None, :, None, :]
        ju = (X + dx + 1) // 2
        Eu = (jnp.arange(wlo + 2)[:, None] == ju[None, :]).astype(jnp.float32)
        Bu = Bu + Eu[None, :, None, :, None] * wu[:, dx][:, None, :, None, :]

    Bs = Bs.reshape(3, (W + 2) * c_skip, W * Cout)
    Bu = Bu.reshape(3, (wlo + 2) * Cu, W * Cout)
    return jnp.concatenate([Bs, Bu], axis=1)     # (3, K, W*Cout) f32


def prepare_decoder_params(raw_params, bottleneck_width, compute_dtype=jnp.bfloat16):
    """Precompute banded weights + packed bias/gamma/beta for every block."""
    prepared = []
    W = bottleneck_width
    for p in raw_params:
        W *= 2                                   # output width of this block
        Cout = p["w"].shape[3]
        c_skip = Cout                            # conv input = cat([residual(Cout), up(x)(2*Cout)])
        Bw = _build_banded_weights(p["w"], c_skip, W).astype(compute_dtype)
        aux = jnp.stack([jnp.tile(p["b"], W),
                         jnp.tile(p["gamma"], W),
                         jnp.tile(p["beta"], W)]).astype(jnp.float32)
        prepared.append({"B": Bw, "aux": aux})
    return prepared


# ---------------------------------------------------------------------------
# UpBlock / Decoder wrappers (NCHW in / NCHW out, like the PyTorch module)
# ---------------------------------------------------------------------------
def upblock_apply(block_params, x_nhwc, skip_nhwc, out_dtype):
    Bw, aux = block_params["B"], block_params["aux"]
    cdt = Bw.dtype
    N, hlo, wlo, Cu = x_nhwc.shape
    _, H, W, Cs = skip_nhwc.shape
    # TODO(synk): general F.pad(dim_diff//2) size matching not fused; standard
    # UNet shapes (skip spatial == exactly 2x input spatial) assumed.
    assert H == 2 * hlo and W == 2 * wlo, "skip must be exactly 2x the input"
    Wc = Bw.shape[2]
    Cout = Wc // W

    # skip branch: conv zero-pad + pack (W+2, Cs) into the lane axis (in bf16).
    sp = jnp.pad(skip_nhwc.astype(cdt), ((0, 0), (1, 1), (1, 1), (0, 0)))
    sp = sp.reshape(N, H + 2, (W + 2) * Cs)

    # up branch: conv zero-pad the SMALL tensor, duplicate rows (nearest 2x in H);
    # the column upsample + dx taps live inside the banded weights.
    xp = jnp.pad(x_nhwc.astype(cdt), ((0, 0), (1, 1), (1, 1), (0, 0)))
    xd = jnp.repeat(xp, 2, axis=1)                          # (N, H+4, wlo+2, Cu)
    xd = xd.reshape(N, H + 4, (wlo + 2) * Cu)

    # Merge both branches along the matmul K axis: row r = concat(skip_pad[r],
    # up_pad[r+1]) so the kernel runs one matmul per dy (3 total instead of 6).
    merged = jnp.concatenate([sp, xd[:, 1:H + 3, :]], axis=-1)   # (N, H+2, K)

    out = _upblock_conv(merged, Bw, aux, H, Wc, out_dtype)       # (N, H, W*Cout)
    return out.reshape(N, H, W, Cout)


def decoder_apply(prepared_params, skip_connections, x_nchw):
    # NCHW -> NHWC once at entry; NHWC -> NCHW once at exit.
    x = jnp.transpose(x_nchw, (0, 2, 3, 1))
    nb = len(prepared_params)
    for i, (skip, bp) in enumerate(zip(reversed(skip_connections), prepared_params)):
        # intermediate blocks store bf16 (next block consumes bf16); last block f32
        out_dtype = jnp.float32 if i == nb - 1 else bp["B"].dtype
        x = upblock_apply(bp, x, jnp.transpose(skip, (0, 2, 3, 1)), out_dtype)
    return jnp.transpose(x, (0, 3, 1, 2))


def init_decoder_params(key, input_dim, num_decoding_blocks):
    params = []
    dim = input_dim
    for _ in range(num_decoding_blocks):
        dim //= 2
        cin, cout = dim * 3, dim                 # UpBlock(dim*(1+2), dim)
        key, kw, kb, kg, kbt = jax.random.split(key, 5)
        fan_in = cin * 9
        w = jax.random.normal(kw, (3, 3, cin, cout), jnp.float32) / jnp.sqrt(fan_in)
        b = 0.01 * jax.random.normal(kb, (cout,), jnp.float32)
        gamma = 1.0 + 0.1 * jax.random.normal(kg, (cout,), jnp.float32)
        beta = 0.1 * jax.random.normal(kbt, (cout,), jnp.float32)
        params.append({"w": w, "b": b, "gamma": gamma, "beta": beta})
    return params


# ---------------------------------------------------------------------------
# Pure-JAX reference (straightforward upsample + concat + conv) for checking
# ---------------------------------------------------------------------------
def reference_decoder(params_list, skip_connections, x, conv_dtype=jnp.bfloat16):
    for skip, p in zip(reversed(skip_connections), params_list):
        x1 = jnp.repeat(jnp.repeat(x, 2, axis=2), 2, axis=3)      # nearest 2x
        xc = jnp.concatenate([skip, x1], axis=1).astype(conv_dtype)
        w_oihw = jnp.transpose(p["w"], (3, 2, 0, 1)).astype(conv_dtype)
        y = lax.conv_general_dilated(xc, w_oihw, (1, 1), ((1, 1), (1, 1)),
                                     dimension_numbers=("NCHW", "OIHW", "NCHW"),
                                     preferred_element_type=jnp.float32)
        y = y + p["b"][None, :, None, None]
        mean = jnp.mean(y, axis=(1, 2, 3), keepdims=True)
        var = jnp.mean((y - mean) ** 2, axis=(1, 2, 3), keepdims=True)
        y = (y - mean) * lax.rsqrt(var + 1e-5)
        y = y * p["gamma"][None, :, None, None] + p["beta"][None, :, None, None]
        x = jnp.maximum(y, 0.0)
    return x


if __name__ == "__main__":
    key = jax.random.PRNGKey(0)
    N, input_dim, num_blocks = 2, 16, 2
    h = w = 8
    k1, k2, k3, kp = jax.random.split(key, 4)

    # bottleneck feature entering the decoder (NCHW, like the PyTorch module)
    x = jax.random.normal(k1, (N, input_dim, h, w), jnp.float32)
    # skip_connections in encoder order (shallow -> deep); decoder uses reversed()
    skip_connections = [
        jax.random.normal(k2, (N, input_dim // 4, 4 * h, 4 * w), jnp.float32),
        jax.random.normal(k3, (N, input_dim // 2, 2 * h, 2 * w), jnp.float32),
    ]
    raw_params = init_decoder_params(kp, input_dim, num_blocks)

    # ---- primary bf16 path: banded weights built once, OUTSIDE the jitted forward
    prep_bf16 = prepare_decoder_params(raw_params, w, jnp.bfloat16)
    fwd = jax.jit(decoder_apply)
    out = fwd(prep_bf16, skip_connections, x)
    jax.block_until_ready(out)

    ref = reference_decoder(raw_params, skip_connections, x, jnp.bfloat16)
    np.testing.assert_allclose(np.asarray(out), np.asarray(ref),
                               rtol=3e-2, atol=3e-2)

    # ---- secondary f32-weights check with a tight tolerance (catches any
    # tap-mapping / band-construction bug that loose bf16 tolerances could mask)
    prep_f32 = prepare_decoder_params(raw_params, w, jnp.float32)
    out32 = jax.jit(decoder_apply)(prep_f32, skip_connections, x)
    jax.block_until_ready(out32)
    ref32 = reference_decoder(raw_params, skip_connections, x, jnp.float32)
    np.testing.assert_allclose(np.asarray(out32), np.asarray(ref32),
                               rtol=1e-3, atol=1e-3)

    print("KERNEL_OK")
</pallas_src>

<mosaic_0001>
module attributes {stable_mosaic.version = 11 : i64} {
  func.func @_upblock_kernel(%arg0: i32, %arg1: memref<1x18x304xbf16, #tpu.memory_space<vmem>>, %arg2: memref<3x304x128xbf16, #tpu.memory_space<vmem>>, %arg3: memref<3x128xf32, #tpu.memory_space<vmem>>, %arg4: memref<1x16x128xbf16, #tpu.memory_space<vmem>>) attributes {dimension_semantics = [#tpu.dimension_semantics<parallel>], iteration_bounds = array<i64: 2>, scalar_prefetch = 0 : i64, scratch_operands = 0 : i64, tpu.core_type = #tpu.core_type<tc>, window_params = [{transform_indices = @transform_0, window_bounds = array<i64: 1, 18, 304>}, {pipeline_mode = #tpu.pipeline_mode<synchronous>, transform_indices = @transform_1, window_bounds = array<i64: 3, 304, 128>}, {pipeline_mode = #tpu.pipeline_mode<synchronous>, transform_indices = @transform_2, window_bounds = array<i64: 3, 128>}, {transform_indices = @transform_3, window_bounds = array<i64: 1, 16, 128>}]} {
    %cst = arith.constant 0.000000e+00 : f32
    %0 = vector.broadcast %cst : f32 to vector<16x128xf32>
    %c0 = arith.constant 0 : index
    %c0_0 = arith.constant 0 : index
    %c0_1 = arith.constant 0 : index
    %1 = vector.load %arg1[%c0, %c0_0, %c0_1] : memref<1x18x304xbf16, #tpu.memory_space<vmem>>, vector<1x16x304xbf16>
    %2 = vector.shape_cast %1 : vector<1x16x304xbf16> to vector<16x304xbf16>
    %c0_2 = arith.constant 0 : index
    %c0_3 = arith.constant 0 : index
    %c0_4 = arith.constant 0 : index
    %3 = vector.load %arg2[%c0_2, %c0_3, %c0_4] : memref<3x304x128xbf16, #tpu.memory_space<vmem>>, vector<1x304x128xbf16>
    %4 = vector.shape_cast %3 : vector<1x304x128xbf16> to vector<304x128xbf16>
    %cst_5 = arith.constant dense<0.000000e+00> : vector<16x128xf32>
    %5 = tpu.matmul %2, %4, %cst_5 {dimension_numbers = #tpu.dot_dimension_numbers<[1], [0], [0], [1], [0, 0, 1, 1], [], []>} : vector<16x304xbf16>, vector<304x128xbf16>, vector<16x128xf32> -> vector<16x128xf32>
    %6 = arith.addf %0, %5 : vector<16x128xf32>
    %c0_6 = arith.constant 0 : index
    %c1 = arith.constant 1 : index
    %c0_7 = arith.constant 0 : index
    %7 = vector.load %arg1[%c0_6, %c1, %c0_7] : memref<1x18x304xbf16, #tpu.memory_space<vmem>>, vector<1x16x304xbf16>
    %8 = vector.shape_cast %7 : vector<1x16x304xbf16> to vector<16x304xbf16>
    %c1_8 = arith.constant 1 : index
    %c0_9 = arith.constant 0 : index
    %c0_10 = arith.constant 0 : index
    %9 = vector.load %arg2[%c1_8, %c0_9, %c0_10] : memref<3x304x128xbf16, #tpu.memory_space<vmem>>, vector<1x304x128xbf16>
    %10 = vector.shape_cast %9 : vector<1x304x128xbf16> to vector<304x128xbf16>
    %cst_11 = arith.constant dense<0.000000e+00> : vector<16x128xf32>
    %11 = tpu.matmul %8, %10, %cst_11 {dimension_numbers = #tpu.dot_dimension_numbers<[1], [0], [0], [1], [0, 0, 1, 1], [], []>} : vector<16x304xbf16>, vector<304x128xbf16>, vector<16x128xf32> -> vector<16x128xf32>
    %12 = arith.addf %6, %11 : vector<16x128xf32>
    %c0_12 = arith.constant 0 : index
    %c2 = arith.constant 2 : index
    %c0_13 = arith.constant 0 : index
    %13 = vector.load %arg1[%c0_12, %c2, %c0_13] : memref<1x18x304xbf16, #tpu.memory_space<vmem>>, vector<1x16x304xbf16>
    %14 = vector.shape_cast %13 : vector<1x16x304xbf16> to vector<16x304xbf16>
    %c2_14 = arith.constant 2 : index
    %c0_15 = arith.constant 0 : index
    %c0_16 = arith.constant 0 : index
    %15 = vector.load %arg2[%c2_14, %c0_15, %c0_16] : memref<3x304x128xbf16, #tpu.memory_space<vmem>>, vector<1x304x128xbf16>
    %16 = vector.shape_cast %15 : vector<1x304x128xbf16> to vector<304x128xbf16>
    %cst_17 = arith.constant dense<0.000000e+00> : vector<16x128xf32>
    %17 = tpu.matmul %14, %16, %cst_17 {dimension_numbers = #tpu.dot_dimension_numbers<[1], [0], [0], [1], [0, 0, 1, 1], [], []>} : vector<16x304xbf16>, vector<304x128xbf16>, vector<16x128xf32> -> vector<16x128xf32>
    %18 = arith.addf %12, %17 : vector<16x128xf32>
    %c0_18 = arith.constant 0 : index
    %c0_19 = arith.constant 0 : index
    %19 = vector.load %arg3[%c0_18, %c0_19] : memref<3x128xf32, #tpu.memory_space<vmem>>, vector<3x128xf32>
    %20 = vector.extract_strided_slice %19 {offsets = [0, 0], sizes = [1, 128], strides = [1, 1]} : vector<3x128xf32> to vector<1x128xf32>
    %21 = vector.broadcast %20 : vector<1x128xf32> to vector<16x128xf32>
    %22 = arith.addf %18, %21 : vector<16x128xf32>
    %cst_20 = arith.constant dense<0.000000e+00> : vector<16xf32>
    %23 = vector.multi_reduction <add>, %22, %cst_20 [1] : vector<16x128xf32> to vector<16xf32>
    %24 = vector.shape_cast %23 : vector<16xf32> to vector<16x1xf32>
    %25 = vector.shape_cast %24 : vector<16x1xf32> to vector<1x16x1xf32>
    %cst_21 = arith.constant dense<0.000000e+00> : vector<1xf32>
    %26 = vector.multi_reduction <add>, %25, %cst_21 [1, 2] : vector<1x16x1xf32> to vector<1xf32>
    %27 = vector.shape_cast %26 : vector<1xf32> to vector<1x1x1xf32>
    %28 = vector.extract %27[0, 0, 0] : f32 from vector<1x1x1xf32>
    %cst_22 = arith.constant 4.8828125E-4 : f32
    %29 = arith.mulf %28, %cst_22 : f32
    %30 = vector.broadcast %29 : f32 to vector<16x128xf32>
    %31 = arith.subf %22, %30 : vector<16x128xf32>
    %32 = arith.mulf %31, %31 : vector<16x128xf32>
    %cst_23 = arith.constant dense<0.000000e+00> : vector<16xf32>
    %33 = vector.multi_reduction <add>, %32, %cst_23 [1] : vector<16x128xf32> to vector<16xf32>
    %34 = vector.shape_cast %33 : vector<16xf32> to vector<16x1xf32>
    %35 = vector.shape_cast %34 : vector<16x1xf32> to vector<1x16x1xf32>
    %cst_24 = arith.constant dense<0.000000e+00> : vector<1xf32>
    %36 = vector.multi_reduction <add>, %35, %cst_24 [1, 2] : vector<1x16x1xf32> to vector<1xf32>
    %37 = vector.shape_cast %36 : vector<1xf32> to vector<1x1x1xf32>
    %38 = vector.extract %37[0, 0, 0] : f32 from vector<1x1x1xf32>
    %cst_25 = arith.constant 4.8828125E-4 : f32
    %39 = arith.mulf %38, %cst_25 : f32
    %cst_26 = arith.constant 9.99999974E-6 : f32
    %40 = arith.addf %39, %cst_26 : f32
    %41 = math.rsqrt %40 : f32
    %42 = vector.extract_strided_slice %19 {offsets = [1, 0], sizes = [1, 128], strides = [1, 1]} : vector<3x128xf32> to vector<1x128xf32>
    %43 = vector.broadcast %41 : f32 to vector<1x128xf32>
    %44 = arith.mulf %43, %42 : vector<1x128xf32>
    %45 = vector.broadcast %44 : vector<1x128xf32> to vector<16x128xf32>
    %46 = arith.mulf %31, %45 : vector<16x128xf32>
    %47 = vector.extract_strided_slice %19 {offsets = [2, 0], sizes = [1, 128], strides = [1, 1]} : vector<3x128xf32> to vector<1x128xf32>
    %48 = vector.broadcast %47 : vector<1x128xf32> to vector<16x128xf32>
    %49 = arith.addf %46, %48 : vector<16x128xf32>
    %cst_27 = arith.constant 0.000000e+00 : f32
    %50 = vector.broadcast %cst_27 : f32 to vector<16x128xf32>
    %51 = arith.maximumf %49, %50 : vector<16x128xf32>
    %52 = arith.truncf %51 : vector<16x128xf32> to vector<16x128xbf16>
    %c0_28 = arith.constant 0 : index
    %c0_29 = arith.constant 0 : index
    %c0_30 = arith.constant 0 : index
    %53 = vector.load %arg4[%c0_28, %c0_29, %c0_30] : memref<1x16x128xbf16, #tpu.memory_space<vmem>>, vector<1x16x128xbf16>
    %54 = vector.shape_cast %53 : vector<1x16x128xbf16> to vector<16x128xbf16>
    %55 = vector.shape_cast %52 : vector<16x128xbf16> to vector<1x16x128xbf16>
    tpu.vector_store %arg4[%c0_28, %c0_29, %c0_30], %55 {strides = array<i32>} : memref<1x16x128xbf16, #tpu.memory_space<vmem>>, vector<1x16x128xbf16>,
    return
  }
  func.func @transform_0(%arg0: i32) -> (i32, i32, i32) {
    %c0_i32 = arith.constant 0 : i32
    %c0_i32_0 = arith.constant 0 : i32
    %c0_i32_1 = arith.constant 0 : i32
    return %arg0, %c0_i32, %c0_i32_0 : i32, i32, i32
  }
  func.func @transform_1(%arg0: i32) -> (i32, i32, i32) {
    %c0_i32 = arith.constant 0 : i32
    %c0_i32_0 = arith.constant 0 : i32
    %c0_i32_1 = arith.constant 0 : i32
    %c0_i32_2 = arith.constant 0 : i32
    return %c0_i32, %c0_i32_0, %c0_i32_1 : i32, i32, i32
  }
  func.func @transform_2(%arg0: i32) -> (i32, i32) {
    %c0_i32 = arith.constant 0 : i32
    %c0_i32_0 = arith.constant 0 : i32
    %c0_i32_1 = arith.constant 0 : i32
    return %c0_i32, %c0_i32_0 : i32, i32
  }
  func.func @transform_3(%arg0: i32) -> (i32, i32, i32) {
    %c0_i32 = arith.constant 0 : i32
    %c0_i32_0 = arith.constant 0 : i32
    %c0_i32_1 = arith.constant 0 : i32
    return %arg0, %c0_i32, %c0_i32_0 : i32, i32, i32
  }
}

module attributes {stable_mosaic.version = 11 : i64} {
  func.func @_upblock_kernel(%arg0: i32, %arg1: memref<1x34x280xbf16, #tpu.memory_space<vmem>>, %arg2: memref<3x280x128xbf16, #tpu.memory_space<vmem>>, %arg3: memref<3x128xf32, #tpu.memory_space<vmem>>, %arg4: memref<1x32x128xf32, #tpu.memory_space<vmem>>) attributes {dimension_semantics = [#tpu.dimension_semantics<parallel>], iteration_bounds = array<i64: 2>, scalar_prefetch = 0 : i64, scratch_operands = 0 : i64, tpu.core_type = #tpu.core_type<tc>, window_params = [{transform_indices = @transform_0, window_bounds = array<i64: 1, 34, 280>}, {pipeline_mode = #tpu.pipeline_mode<synchronous>, transform_indices = @transform_1, window_bounds = array<i64: 3, 280, 128>}, {pipeline_mode = #tpu.pipeline_mode<synchronous>, transform_indices = @transform_2, window_bounds = array<i64: 3, 128>}, {transform_indices = @transform_3, window_bounds = array<i64: 1, 32, 128>}]} {
    %cst = arith.constant 0.000000e+00 : f32
    %0 = vector.broadcast %cst : f32 to vector<32x128xf32>
    %c0 = arith.constant 0 : index
    %c0_0 = arith.constant 0 : index
    %c0_1 = arith.constant 0 : index
    %1 = vector.load %arg1[%c0, %c0_0, %c0_1] : memref<1x34x280xbf16, #tpu.memory_space<vmem>>, vector<1x32x280xbf16>
    %2 = vector.shape_cast %1 : vector<1x32x280xbf16> to vector<32x280xbf16>
    %c0_2 = arith.constant 0 : index
    %c0_3 = arith.constant 0 : index
    %c0_4 = arith.constant 0 : index
    %3 = vector.load %arg2[%c0_2, %c0_3, %c0_4] : memref<3x280x128xbf16, #tpu.memory_space<vmem>>, vector<1x280x128xbf16>
    %4 = vector.shape_cast %3 : vector<1x280x128xbf16> to vector<280x128xbf16>
    %cst_5 = arith.constant dense<0.000000e+00> : vector<32x128xf32>
    %5 = tpu.matmul %2, %4, %cst_5 {dimension_numbers = #tpu.dot_dimension_numbers<[1], [0], [0], [1], [0, 0, 1, 1], [], []>} : vector<32x280xbf16>, vector<280x128xbf16>, vector<32x128xf32> -> vector<32x128xf32>
    %6 = arith.addf %0, %5 : vector<32x128xf32>
    %c0_6 = arith.constant 0 : index
    %c1 = arith.constant 1 : index
    %c0_7 = arith.constant 0 : index
    %7 = vector.load %arg1[%c0_6, %c1, %c0_7] : memref<1x34x280xbf16, #tpu.memory_space<vmem>>, vector<1x32x280xbf16>
    %8 = vector.shape_cast %7 : vector<1x32x280xbf16> to vector<32x280xbf16>
    %c1_8 = arith.constant 1 : index
    %c0_9 = arith.constant 0 : index
    %c0_10 = arith.constant 0 : index
    %9 = vector.load %arg2[%c1_8, %c0_9, %c0_10] : memref<3x280x128xbf16, #tpu.memory_space<vmem>>, vector<1x280x128xbf16>
    %10 = vector.shape_cast %9 : vector<1x280x128xbf16> to vector<280x128xbf16>
    %cst_11 = arith.constant dense<0.000000e+00> : vector<32x128xf32>
    %11 = tpu.matmul %8, %10, %cst_11 {dimension_numbers = #tpu.dot_dimension_numbers<[1], [0], [0], [1], [0, 0, 1, 1], [], []>} : vector<32x280xbf16>, vector<280x128xbf16>, vector<32x128xf32> -> vector<32x128xf32>
    %12 = arith.addf %6, %11 : vector<32x128xf32>
    %c0_12 = arith.constant 0 : index
    %c2 = arith.constant 2 : index
    %c0_13 = arith.constant 0 : index
    %13 = vector.load %arg1[%c0_12, %c2, %c0_13] : memref<1x34x280xbf16, #tpu.memory_space<vmem>>, vector<1x32x280xbf16>
    %14 = vector.shape_cast %13 : vector<1x32x280xbf16> to vector<32x280xbf16>
    %c2_14 = arith.constant 2 : index
    %c0_15 = arith.constant 0 : index
    %c0_16 = arith.constant 0 : index
    %15 = vector.load %arg2[%c2_14, %c0_15, %c0_16] : memref<3x280x128xbf16, #tpu.memory_space<vmem>>, vector<1x280x128xbf16>
    %16 = vector.shape_cast %15 : vector<1x280x128xbf16> to vector<280x128xbf16>
    %cst_17 = arith.constant dense<0.000000e+00> : vector<32x128xf32>
    %17 = tpu.matmul %14, %16, %cst_17 {dimension_numbers = #tpu.dot_dimension_numbers<[1], [0], [0], [1], [0, 0, 1, 1], [], []>} : vector<32x280xbf16>, vector<280x128xbf16>, vector<32x128xf32> -> vector<32x128xf32>
    %18 = arith.addf %12, %17 : vector<32x128xf32>
    %c0_18 = arith.constant 0 : index
    %c0_19 = arith.constant 0 : index
    %19 = vector.load %arg3[%c0_18, %c0_19] : memref<3x128xf32, #tpu.memory_space<vmem>>, vector<3x128xf32>
    %20 = vector.extract_strided_slice %19 {offsets = [0, 0], sizes = [1, 128], strides = [1, 1]} : vector<3x128xf32> to vector<1x128xf32>
    %21 = vector.broadcast %20 : vector<1x128xf32> to vector<32x128xf32>
    %22 = arith.addf %18, %21 : vector<32x128xf32>
    %cst_20 = arith.constant dense<0.000000e+00> : vector<32xf32>
    %23 = vector.multi_reduction <add>, %22, %cst_20 [1] : vector<32x128xf32> to vector<32xf32>
    %24 = vector.shape_cast %23 : vector<32xf32> to vector<32x1xf32>
    %25 = vector.shape_cast %24 : vector<32x1xf32> to vector<1x32x1xf32>
    %cst_21 = arith.constant dense<0.000000e+00> : vector<1xf32>
    %26 = vector.multi_reduction <add>, %25, %cst_21 [1, 2] : vector<1x32x1xf32> to vector<1xf32>
    %27 = vector.shape_cast %26 : vector<1xf32> to vector<1x1x1xf32>
    %28 = vector.extract %27[0, 0, 0] : f32 from vector<1x1x1xf32>
    %cst_22 = arith.constant 2.44140625E-4 : f32
    %29 = arith.mulf %28, %cst_22 : f32
    %30 = vector.broadcast %29 : f32 to vector<32x128xf32>
    %31 = arith.subf %22, %30 : vector<32x128xf32>
    %32 = arith.mulf %31, %31 : vector<32x128xf32>
    %cst_23 = arith.constant dense<0.000000e+00> : vector<32xf32>
    %33 = vector.multi_reduction <add>, %32, %cst_23 [1] : vector<32x128xf32> to vector<32xf32>
    %34 = vector.shape_cast %33 : vector<32xf32> to vector<32x1xf32>
    %35 = vector.shape_cast %34 : vector<32x1xf32> to vector<1x32x1xf32>
    %cst_24 = arith.constant dense<0.000000e+00> : vector<1xf32>
    %36 = vector.multi_reduction <add>, %35, %cst_24 [1, 2] : vector<1x32x1xf32> to vector<1xf32>
    %37 = vector.shape_cast %36 : vector<1xf32> to vector<1x1x1xf32>
    %38 = vector.extract %37[0, 0, 0] : f32 from vector<1x1x1xf32>
    %cst_25 = arith.constant 2.44140625E-4 : f32
    %39 = arith.mulf %38, %cst_25 : f32
    %cst_26 = arith.constant 9.99999974E-6 : f32
    %40 = arith.addf %39, %cst_26 : f32
    %41 = math.rsqrt %40 : f32
    %42 = vector.extract_strided_slice %19 {offsets = [1, 0], sizes = [1, 128], strides = [1, 1]} : vector<3x128xf32> to vector<1x128xf32>
    %43 = vector.broadcast %41 : f32 to vector<1x128xf32>
    %44 = arith.mulf %43, %42 : vector<1x128xf32>
    %45 = vector.broadcast %44 : vector<1x128xf32> to vector<32x128xf32>
    %46 = arith.mulf %31, %45 : vector<32x128xf32>
    %47 = vector.extract_strided_slice %19 {offsets = [2, 0], sizes = [1, 128], strides = [1, 1]} : vector<3x128xf32> to vector<1x128xf32>
    %48 = vector.broadcast %47 : vector<1x128xf32> to vector<32x128xf32>
    %49 = arith.addf %46, %48 : vector<32x128xf32>
    %cst_27 = arith.constant 0.000000e+00 : f32
    %50 = vector.broadcast %cst_27 : f32 to vector<32x128xf32>
    %51 = arith.maximumf %49, %50 : vector<32x128xf32>
    %c0_28 = arith.constant 0 : index
    %c0_29 = arith.constant 0 : index
    %c0_30 = arith.constant 0 : index
    %52 = vector.load %arg4[%c0_28, %c0_29, %c0_30] : memref<1x32x128xf32, #tpu.memory_space<vmem>>, vector<1x32x128xf32>
    %53 = vector.shape_cast %52 : vector<1x32x128xf32> to vector<32x128xf32>
    %54 = vector.shape_cast %51 : vector<32x128xf32> to vector<1x32x128xf32>
    tpu.vector_store %arg4[%c0_28, %c0_29, %c0_30], %54 {strides = array<i32>} : memref<1x32x128xf32, #tpu.memory_space<vmem>>, vector<1x32x128xf32>,
    return
  }
  func.func @transform_0(%arg0: i32) -> (i32, i32, i32) {
    %c0_i32 = arith.constant 0 : i32
    %c0_i32_0 = arith.constant 0 : i32
    %c0_i32_1 = arith.constant 0 : i32
    return %arg0, %c0_i32, %c0_i32_0 : i32, i32, i32
  }
  func.func @transform_1(%arg0: i32) -> (i32, i32, i32) {
    %c0_i32 = arith.constant 0 : i32
    %c0_i32_0 = arith.constant 0 : i32
    %c0_i32_1 = arith.constant 0 : i32
    %c0_i32_2 = arith.constant 0 : i32
    return %c0_i32, %c0_i32_0, %c0_i32_1 : i32, i32, i32
  }
  func.func @transform_2(%arg0: i32) -> (i32, i32) {
    %c0_i32 = arith.constant 0 : i32
    %c0_i32_0 = arith.constant 0 : i32
    %c0_i32_1 = arith.constant 0 : i32
    return %c0_i32, %c0_i32_0 : i32, i32
  }
  func.func @transform_3(%arg0: i32) -> (i32, i32, i32) {
    %c0_i32 = arith.constant 0 : i32
    %c0_i32_0 = arith.constant 0 : i32
    %c0_i32_1 = arith.constant 0 : i32
    return %arg0, %c0_i32, %c0_i32_0 : i32, i32, i32
  }
}

</mosaic_0001>

<llo_original>
// kernel: decoder_apply.2
$region0: #{decoder_apply.2}
  #allocation0 [shape = 'u32[]', space=smem, size = 0x4, offset = 0x4, fixed_abs, tag = 'smem constant byte address 0x4 - core index']
  #allocation1 [shape = 'u32[144,128]{1,0:T(1,128)}', space=vmem, size = 0x12000, scoped, tag = 'internal scratch']
  %s0 = inlined_call_operand.vmem [shape: bf16[2,18,304], index: 0, kind: input, shape index: {}]
  %s1 = inlined_call_operand.vmem [shape: bf16[3,304,128], index: 1, kind: input, shape index: {}]
  %s2 = inlined_call_operand.vmem [shape: f32[3,128], index: 2, kind: input, shape index: {}]
  %s3 = inlined_call_operand.vmem [shape: bf16[2,16,128], index: 3, kind: output, shape index: {}]
  %s4 = sld [smem:[#allocation0]]
  $region45: #{decoder_apply.2} parent=0
    _
  %s6 = ssub.s32 1, %s4
  %s7 = scalar_select 0, %s6, %s4
  loop: start=0, step=1, limit=4
  $region2: #{decoder_apply.2} parent=0 // loop_pre_header
    _
  $region3: #{decoder_apply.2} parent=0 // loop_header
    %s9 = sphi 0, %s13
    %p10 = scmp.ge.s32.totalorder %s9, 4
    %s19 = sphi 0, %s21
    %s22 = sphi 0, %s19
    %s23 = sphi 0, %s22
    %s39 = sphi 0, %s23
    %s43 = sphi 0, %s43
    %s45 = sphi 0, %s43
    %s46 = sphi 0, %s45
    %s60 = sphi 0, %s46
    %s64 = sphi 0, %s64
    %s66 = sphi 0, %s64
    %s67 = sphi 0, %s66
    %s81 = sphi 0, %s67
    %s87 = sphi 0, %s89
    %s90 = sphi 0, %s87
    %s91 = sphi 0, %s90
    %s107 = sphi 0, %s91
  $region4: #{decoder_apply.2} parent=0 // loop_header_branch
    %12 = sbr.rel (%p10) target = $region8
  $region5: #{decoder_apply.2} parent=0 // loop_body
    %s14 = ssub.s32 %s9, 1
    %s15 = ssub.s32 %s9, 2
    %s16 = sadd.s32 %s9, 1
    %s17 = ssub.s32 %s9, %s16
    %p18 = scmp.eq.s32.totalorder %s17, 0
    %s20 = sadd.s32 %s19, 1
    %s21 = scalar_select %p18, %s19, %s20
    %p24 = pneg %p18
    %p25 = scmp.eq.s32.totalorder %s9, 1
    %p26 = por %p24, %p25
    %p27 = scmp.ne.s32.totalorder %s19, %s22
    %p28 = scmp.eq.s32.totalorder %s9, 0
    %p29 = por %p27, %p28
    %p30 = scmp.ne.s32.totalorder %s19, %s22
    %p31 = scmp.eq.s32.totalorder %s14, 1
    %p32 = por %p30, %p31
    %p33 = scmp.ne.s32.totalorder %s22, %s23
    %p34 = scmp.eq.s32.totalorder %s14, 0
    %p35 = por %p33, %p34
    %p36 = scmp.ne.s32.totalorder %s22, %s23
    %p37 = scmp.eq.s32.totalorder %s15, 1
    %p38 = por %p36, %p37
    %p40 = scmp.ne.s32.totalorder %s23, %s39
    %p41 = scmp.eq.s32.totalorder %s15, 0
    %p42 = por %p40, %p41
    %s44 = sadd.s32 %s43, 1
    %p47 = scmp.eq.s32.totalorder %s9, 1
    %p48 = scmp.ne.s32.totalorder %s43, %s45
    %p49 = scmp.eq.s32.totalorder %s9, 0
    %p50 = por %p48, %p49
    %p51 = scmp.ne.s32.totalorder %s43, %s45
    %p52 = scmp.eq.s32.totalorder %s14, 1
    %p53 = por %p51, %p52
    %p54 = scmp.ne.s32.totalorder %s45, %s46
    %p55 = scmp.eq.s32.totalorder %s14, 0
    %p56 = por %p54, %p55
    %p57 = scmp.ne.s32.totalorder %s45, %s46
    %p58 = scmp.eq.s32.totalorder %s15, 1
    %p59 = por %p57, %p58
    %p61 = scmp.ne.s32.totalorder %s46, %s60
    %p62 = scmp.eq.s32.totalorder %s15, 0
    %p63 = por %p61, %p62
    %s65 = sadd.s32 %s64, 1
    %p68 = scmp.eq.s32.totalorder %s9, 1
    %p69 = scmp.ne.s32.totalorder %s64, %s66
    %p70 = scmp.eq.s32.totalorder %s9, 0
    %p71 = por %p69, %p70
    %p72 = scmp.ne.s32.totalorder %s64, %s66
    %p73 = scmp.eq.s32.totalorder %s14, 1
    %p74 = por %p72, %p73
    %p75 = scmp.ne.s32.totalorder %s66, %s67
    %p76 = scmp.eq.s32.totalorder %s14, 0
    %p77 = por %p75, %p76
    %p78 = scmp.ne.s32.totalorder %s66, %s67
    %p79 = scmp.eq.s32.totalorder %s15, 1
    %p80 = por %p78, %p79
    %p82 = scmp.ne.s32.totalorder %s67, %s81
    %p83 = scmp.eq.s32.totalorder %s15, 0
    %p84 = por %p82, %p83
    %s85 = ssub.s32 %s9, %s16
    %p86 = scmp.eq.s32.totalorder %s85, 0
    %s88 = sadd.s32 %s87, 1
    %s89 = scalar_select %p86, %s87, %s88
    %p92 = pneg %p86
    %p93 = scmp.eq.s32.totalorder %s9, 1
    %p94 = por %p92, %p93
    %p95 = scmp.ne.s32.totalorder %s87, %s90
    %p96 = scmp.eq.s32.totalorder %s9, 0
    %p97 = por %p95, %p96
    %p98 = scmp.ne.s32.totalorder %s87, %s90
    %p99 = scmp.eq.s32.totalorder %s14, 1
    %p100 = por %p98, %p99
    %p101 = scmp.ne.s32.totalorder %s90, %s91
    %p102 = scmp.eq.s32.totalorder %s14, 0
    %p103 = por %p101, %p102
    %p104 = scmp.ne.s32.totalorder %s90, %s91
    %p105 = scmp.eq.s32.totalorder %s15, 1
    %p106 = por %p104, %p105
    %p108 = scmp.ne.s32.totalorder %s91, %s107
    %p109 = scmp.eq.s32.totalorder %s15, 0
    %p110 = por %p108, %p109
    %p111 = scmp.le.s32.totalorder 1, %s9
    %p112 = scmp.lt.s32.totalorder %s9, 3
    %p113 = pnand %p111, %p112
    %p114 = pneg %p113
    // Predicated region
    $region9: #{decoder_apply.2} parent=5 // pred_check
      _
    $region10: #{decoder_apply.2} parent=5 // pred_check_branch
      %116 = sbr.rel (%p113) target = $region12
    $region11: #{decoder_apply.2} parent=5 // pred_region
      %s117 = ssub.s32 %s9, 1
      // Predicated region
      $region13: #{decoder_apply.2} parent=11 // pred_check
        %p118 = pneg %p56
      $region14: #{decoder_apply.2} parent=11 // pred_check_branch
        %120 = sbr.rel (%p118) target = $region16
      $region15: #{decoder_apply.2} parent=11 // pred_region
        _
      $region16: #{decoder_apply.2} parent=11 // pred_fallthru
        _
      // Predicated region
      $region17: #{decoder_apply.2} parent=11 // pred_check
        %p121 = pneg %p77
      $region18: #{decoder_apply.2} parent=11 // pred_check_branch
        %123 = sbr.rel (%p121) target = $region20
      $region19: #{decoder_apply.2} parent=11 // pred_region
        _
      $region20: #{decoder_apply.2} parent=11 // pred_fallthru
        _
    $region12: #{decoder_apply.2} parent=5 // pred_fallthru
      _
    %p124 = scmp.lt.s32.totalorder %s9, 2
    // Predicated region
    $region21: #{decoder_apply.2} parent=5 // pred_check
      %p125 = pneg %p124
    $region22: #{decoder_apply.2} parent=5 // pred_check_branch
      %127 = sbr.rel (%p125) target = $region24
    $region23: #{decoder_apply.2} parent=5 // pred_region
      // Predicated region
      $region25: #{decoder_apply.2} parent=23 // pred_check
        %p128 = pneg %p29
      $region26: #{decoder_apply.2} parent=23 // pred_check_branch
        %130 = sbr.rel (%p128) target = $region28
      $region27: #{decoder_apply.2} parent=23 // pred_region
        %p131 = scmp.lt.s32.totalorder %s9, 1
        %s132 = scalar_select %p131, %s9, 1
        %s133 = smul.addr %s132, 9
        %s134 = smul.addr %s133, 4
        %s135 = scalar_lea.vmem %s0, %s134
      $region28: #{decoder_apply.2} parent=23 // pred_fallthru
        _
    $region24: #{decoder_apply.2} parent=5 // pred_fallthru
      _
    %p136 = scmp.le.s32.totalorder 1, %s9
    %p137 = scmp.lt.s32.totalorder %s9, 3
    %p138 = pnand %p136, %p137
    %p139 = pneg %p138
    // Predicated region
    $region29: #{decoder_apply.2} parent=5 // pred_check
      _
    $region30: #{decoder_apply.2} parent=5 // pred_check_branch
      %141 = sbr.rel (%p138) target = $region32
    $region31: #{decoder_apply.2} parent=5 // pred_region
      %s142 = ssub.s32 %s9, 1
      %p143 = scmp.lt.s32.totalorder %s14, 1
      %s144 = scalar_select %p143, %s14, 1
      %s145 = smul.addr %s144, 9
      %s146 = smul.addr %s145, 4
      %s147 = scalar_lea.vmem %s0, %s146
      %p148 = pneg %p35
      %p149 = pneg %p32
      %p150 = pneg %p56
      %p151 = pneg %p53
      %p152 = pneg %p77
      %p153 = pneg %p74
      %p154 = pneg %p103
      %p155 = pneg %p100
      %p156 = scmp.lt.s32.totalorder %s14, 1
      %s157 = scalar_select %p156, %s14, 1
      %s158 = smul.addr %s157, 2
      %s159 = smul.addr %s158, 4
      %s160 = scalar_lea.vmem %s3, %s159
      %p161 = scmp.lt.s32.totalorder %s14, 1
      %s162 = scalar_select %p161, %s14, 1
      %s163 = smul.addr %s162, 9
      %s164 = smul.addr %s163, 4
      %s165 = scalar_lea.vmem %s0, %s164
      %p166 = scmp.lt.s32.totalorder %s14, 1
      %s167 = scalar_select %p166, %s14, 1
      %s168 = smul.addr %s167, 2
      %s169 = smul.addr %s168, 4
      %s170 = scalar_lea.vmem %s3, %s169
      %v172 = vld [vmem:[%s165] sm:$0xff]
      %v173 = vld [vmem:[%s165 + $0x8] sm:$0xf]
      %v174 = vld [vmem:[%s165 + $0xc] sm:$0xff]
      %v175 = vld [vmem:[%s165 + $0x14] sm:$0xf]
      %v176 = vld [vmem:[%s1] sm:$0xf]
      %v177 = vld [vmem:[%s1 + $0x4] sm:$0xf]
      %v178 = vld [vmem:[%s1 + $0x8] sm:$0xf]
      %v179 = vld [vmem:[%s1 + $0xc] sm:$0xf]
      %v180 = vld [vmem:[%s1 + $0x10] sm:$0xf]
      %v181 = vld [vmem:[%s1 + $0x14] sm:$0xf]
      %v182 = vld [vmem:[%s1 + $0x18] sm:$0xf]
      %v183 = vld [vmem:[%s1 + $0x1c] sm:$0xf]
      %v184 = vld [vmem:[%s1 + $0x20] sm:$0xf]
      %v185 = vld [vmem:[%s1 + $0x24] sm:$0xf]
      %v186 = vld [vmem:[%s1 + $0x28] sm:$0xf]
      %v187 = vld [vmem:[%s1 + $0x2c] sm:$0xf]
      %v188 = vld [vmem:[%s1 + $0x30] sm:$0xf]
      %v189 = vld [vmem:[%s1 + $0x34] sm:$0xf]
      %v190 = vld [vmem:[%s1 + $0x38] sm:$0xf]
      %v191 = vld [vmem:[%s1 + $0x3c] sm:$0xf]
      %v192 = vld [vmem:[%s1 + $0x40] sm:$0xf]
      %v193 = vld [vmem:[%s1 + $0x44] sm:$0xf]
      %v194 = vld [vmem:[%s1 + $0x48] sm:$0xf]
      %v195 = vld [vmem:[%s1 + $0x4c] sm:$0xf]
      %v196 = vld [vmem:[%s1 + $0x50] sm:$0xf]
      %v197 = vld [vmem:[%s1 + $0x54] sm:$0xf]
      %v198 = vld [vmem:[%s1 + $0x58] sm:$0xf]
      %v199 = vld [vmem:[%s1 + $0x5c] sm:$0xf]
      %v200 = vld [vmem:[%s1 + $0x60] sm:$0xf]
      %v201 = vld [vmem:[%s1 + $0x64] sm:$0xf]
      %v202 = vld [vmem:[%s1 + $0x68] sm:$0xf]
      %v203 = vld [vmem:[%s1 + $0x6c] sm:$0xf]
      %v204 = vld [vmem:[%s1 + $0x70] sm:$0xf]
      %v205 = vld [vmem:[%s1 + $0x74] sm:$0xf]
      %v206 = vld [vmem:[%s1 + $0x78] sm:$0xf]
      %v207 = vld [vmem:[%s1 + $0x7c] sm:$0xf]
      %v208 = vld [vmem:[%s1 + $0x80] sm:$0xf]
      %v209 = vld [vmem:[%s1 + $0x84] sm:$0xf]
      %v210 = vld [vmem:[%s1 + $0x88] sm:$0xf]
      %v211 = vld [vmem:[%s1 + $0x8c] sm:$0xf]
      %v212 = vld [vmem:[%s1 + $0x90] sm:$0xf]
      %v213 = vld [vmem:[%s1 + $0x94] sm:$0xf]
      %v214 = vld [vmem:[%s165 + $0x18] sm:$0x11]
      %v215 = vld [vmem:[%s165 + $0x20] sm:$0x1]
      %s216 = scalar_lea.vmem %s1, 152
      %v217 = vld [vmem:[%s216] sm:$0xf]
      %v218 = vld [vmem:[%s216 + $0x4] sm:$0xf]
      %v219 = vld [vmem:[%s216 + $0x8] sm:$0xf]
      %v220 = vld [vmem:[%s216 + $0xc] sm:$0xf]
      %v221 = vld [vmem:[%s216 + $0x10] sm:$0xf]
      %v222 = vld [vmem:[%s216 + $0x14] sm:$0xf]
      %v223 = vld [vmem:[%s216 + $0x18] sm:$0xf]
      %v224 = vld [vmem:[%s216 + $0x1c] sm:$0xf]
      %v225 = vld [vmem:[%s216 + $0x20] sm:$0xf]
      %v226 = vld [vmem:[%s216 + $0x24] sm:$0xf]
      %v227 = vld [vmem:[%s216 + $0x28] sm:$0xf]
      %v228 = vld [vmem:[%s216 + $0x2c] sm:$0xf]
      %v229 = vld [vmem:[%s216 + $0x30] sm:$0xf]
      %v230 = vld [vmem:[%s216 + $0x34] sm:$0xf]
      %v231 = vld [vmem:[%s216 + $0x38] sm:$0xf]
      %v232 = vld [vmem:[%s216 + $0x3c] sm:$0xf]
      %v233 = vld [vmem:[%s216 + $0x40] sm:$0xf]
      %v234 = vld [vmem:[%s216 + $0x44] sm:$0xf]
      %v235 = vld [vmem:[%s216 + $0x48] sm:$0xf]
      %v236 = vld [vmem:[%s216 + $0x4c] sm:$0xf]
      %v237 = vld [vmem:[%s216 + $0x50] sm:$0xf]
      %v238 = vld [vmem:[%s216 + $0x54] sm:$0xf]
      %v239 = vld [vmem:[%s216 + $0x58] sm:$0xf]
      %v240 = vld [vmem:[%s216 + $0x5c] sm:$0xf]
      %v241 = vld [vmem:[%s216 + $0x60] sm:$0xf]
      %v242 = vld [vmem:[%s216 + $0x64] sm:$0xf]
      %v243 = vld [vmem:[%s216 + $0x68] sm:$0xf]
      %v244 = vld [vmem:[%s216 + $0x6c] sm:$0xf]
      %v245 = vld [vmem:[%s216 + $0x70] sm:$0xf]
      %v246 = vld [vmem:[%s216 + $0x74] sm:$0xf]
      %v247 = vld [vmem:[%s216 + $0x78] sm:$0xf]
      %v248 = vld [vmem:[%s216 + $0x7c] sm:$0xf]
      %v249 = vld [vmem:[%s216 + $0x80] sm:$0xf]
      %v250 = vld [vmem:[%s216 + $0x84] sm:$0xf]
      %v251 = vld [vmem:[%s216 + $0x88] sm:$0xf]
      %v252 = vld [vmem:[%s216 + $0x8c] sm:$0xf]
      %v253 = vld [vmem:[%s216 + $0x90] sm:$0xf]
      %v254 = vld [vmem:[%s216 + $0x94] sm:$0xf]
      %v261 = vunpack.c.l.b16 %v172
      %v262 = vunpack.c.h.b16 %v172
      %v263 = vunpack.c.l.b16 %v173
      %v264 = vunpack.c.l.b16 %v174
      %v265 = vunpack.c.h.b16 %v174
      %v266 = vunpack.c.l.b16 %v175
      %v267 = vunpack.c.l.b16 %v214
      %v268 = vunpack.c.h.b16 %v214
      %v269 = vunpack.c.l.b16 %v215
      %v270 = vpack.c.b16 %v264, %v261
      %v271 = vpack.c.b16 %v265, %v262
      %v272 = vpack.c.b16 %v266, %v263
      %v273 = vpack.c.b16 %v267, %v267
      %v274 = vpack.c.b16 %v268, %v268
      %v275 = vpack.c.b16 %v269, %v269
      %vm276 = vsmask.f32 7424
      %v278 = vshrl.u32 %v270, 16
      %v280 = vshll.u32 %v270, 16
      %v282 = vrot.slane %v280, 1
      %v283 = vor.u32 %v278, %v282
      %v285 = vshll.u32 %v273, 16
      %v287 = vrot.slane %v285, 1
      %v288 = vsel %vm276, %v283, %v287
      %v290 = vshrl.u32 %v271, 16
      %v292 = vshll.u32 %v271, 16
      %v294 = vrot.slane %v292, 1
      %v295 = vor.u32 %v290, %v294
      %v297 = vshll.u32 %v274, 16
      %v299 = vrot.slane %v297, 1
      %v300 = vsel %vm276, %v295, %v299
      %v302 = vshrl.u32 %v272, 16
      %v304 = vshll.u32 %v272, 16
      %v306 = vrot.slane %v304, 1
      %v307 = vor.u32 %v302, %v306
      %v309 = vshll.u32 %v275, 16
      %v311 = vrot.slane %v309, 1
      %v312 = vsel %vm276, %v307, %v311
      %v353 = vunpack.c.l.b16 %v217
      %v354 = vunpack.c.l.b16 %v218
      %v355 = vunpack.c.l.b16 %v219
      %v356 = vunpack.c.l.b16 %v220
      %v357 = vunpack.c.l.b16 %v221
      %v358 = vunpack.c.l.b16 %v222
      %v359 = vunpack.c.l.b16 %v223
      %v360 = vunpack.c.l.b16 %v224
      %v361 = vunpack.c.l.b16 %v225
      %v362 = vunpack.c.l.b16 %v226
      %v363 = vunpack.c.l.b16 %v227
      %v364 = vunpack.c.l.b16 %v228
      %v365 = vunpack.c.l.b16 %v229
      %v366 = vunpack.c.l.b16 %v230
      %v367 = vunpack.c.l.b16 %v231
      %v368 = vunpack.c.l.b16 %v232
      %v369 = vunpack.c.l.b16 %v233
      %v370 = vunpack.c.l.b16 %v234
      %v371 = vunpack.c.l.b16 %v235
      %v372 = vunpack.c.l.b16 %v236
      %v373 = vunpack.c.l.b16 %v237
      %v374 = vunpack.c.l.b16 %v238
      %v375 = vunpack.c.l.b16 %v239
      %v376 = vunpack.c.l.b16 %v240
      %v377 = vunpack.c.l.b16 %v241
      %v378 = vunpack.c.l.b16 %v242
      %v379 = vunpack.c.l.b16 %v243
      %v380 = vunpack.c.l.b16 %v244
      %v381 = vunpack.c.l.b16 %v245
      %v382 = vunpack.c.l.b16 %v246
      %v383 = vunpack.c.l.b16 %v247
      %v384 = vunpack.c.l.b16 %v248
      %v385 = vunpack.c.l.b16 %v249
      %v386 = vunpack.c.l.b16 %v250
      %v387 = vunpack.c.l.b16 %v251
      %v388 = vunpack.c.l.b16 %v252
      %v389 = vunpack.c.l.b16 %v253
      %v390 = vunpack.c.l.b16 %v254
      %v391 = vpack.c.b16 %v354, %v353
      %v392 = vpack.c.b16 %v356, %v355
      %v393 = vpack.c.b16 %v358, %v357
      %v394 = vpack.c.b16 %v360, %v359
      %v395 = vpack.c.b16 %v362, %v361
      %v396 = vpack.c.b16 %v364, %v363
      %v397 = vpack.c.b16 %v366, %v365
      %v398 = vpack.c.b16 %v368, %v367
      %v399 = vpack.c.b16 %v370, %v369
      %v400 = vpack.c.b16 %v372, %v371
      %v401 = vpack.c.b16 %v374, %v373
      %v402 = vpack.c.b16 %v376, %v375
      %v403 = vpack.c.b16 %v378, %v377
      %v404 = vpack.c.b16 %v380, %v379
      %v405 = vpack.c.b16 %v382, %v381
      %v406 = vpack.c.b16 %v384, %v383
      %v407 = vpack.c.b16 %v386, %v385
      %v408 = vpack.c.b16 %v388, %v387
      %v409 = vpack.c.b16 %v390, %v389
      %vm429 = vcmask 392192
      %v431 = vsel %vm429, %v312, 0
      %433 = vmatprep.subr.bf16.mxu0 0
      %434 = vmatpush1.bf16.msra.mxu0 %v391
      %435 = vmatprep.subr.bf16.mxu0 0
      %436 = vmatpush1.bf16.msra.mxu0 %v392
      %437 = vmatprep.subr.bf16.mxu0 0
      %438 = vmatpush1.bf16.msra.mxu0 %v393
      %439 = vmatprep.subr.bf16.mxu0 0
      %440 = vmatpush1.bf16.msra.mxu0 %v394
      %441 = vmatprep.subr.bf16.mxu0 0
      %442 = vmatpush1.bf16.msra.mxu0 %v395
      %443 = vmatprep.subr.bf16.mxu0 0
      %444 = vmatpush1.bf16.msra.mxu0 %v396
      %445 = vmatprep.subr.bf16.mxu0 0
      %446 = vmatpush1.bf16.msra.mxu0 %v397
      %447 = vmatprep.subr.bf16.mxu0 0
      %448 = vmatpush1.bf16.msra.mxu0 %v398
      %449 = vmatprep.subr.bf16.mxu0 0
      %450 = vmatpush1.bf16.msra.mxu0 %v399
      %451 = vmatprep.subr.bf16.mxu0 0
      %452 = vmatpush1.bf16.msra.mxu0 %v400
      %453 = vmatprep.subr.bf16.mxu0 0
      %454 = vmatpush1.bf16.msra.mxu0 %v401
      %455 = vmatprep.subr.bf16.mxu0 0
      %456 = vmatpush1.bf16.msra.mxu0 %v402
      %457 = vmatprep.subr.bf16.mxu0 0
      %458 = vmatpush1.bf16.msra.mxu0 %v403
      %459 = vmatprep.subr.bf16.mxu0 0
      %460 = vmatpush1.bf16.msra.mxu0 %v404
      %461 = vmatprep.subr.bf16.mxu0 0
      %462 = vmatpush1.bf16.msra.mxu0 %v405
      %463 = vmatprep.subr.bf16.mxu0 0
      %464 = vmatpush1.bf16.msra.mxu0 %v406
      %465 = vmatprep.mubr.bf16.mxu0 %v300
      %466 = vmatmul.mubr.bf16.gmra.mrb[0].mxu0 %v288
      %v467 = vpop.f32.mrb[0].mxu0
      %v468 = vadd.f32 0.0, %v467
      %v469 = vpop.f32.mrb[0].mxu0
      %v470 = vpop.f32.mrb[0].mxu0
      %v471 = vadd.f32 0.0, %v470
      %v472 = vpop.f32.mrb[0].mxu0
      %473 = vdwg.mxu0
      %474 = vmatprep.subr.bf16.mxu0 0
      %475 = vmatpush1.bf16.msra.mxu0 %v407
      %476 = vmatprep.subr.bf16.mxu0 0
      %477 = vmatpush1.bf16.msra.mxu0 %v408
      %478 = vmatprep.subr.bf16.mxu0 0
      %479 = vmatpush1.bf16.msra.mxu0 %v409
      %480 = vmatprep.subr.bf16.mxu0 0
      %481 = vmatpush1.bf16.msra.mxu0 0
      %482 = vmatprep.subr.bf16.mxu0 0
      %483 = vmatpush1.bf16.msra.mxu0 0
      %484 = vmatprep.subr.bf16.mxu0 0
      %485 = vmatpush1.bf16.msra.mxu0 0
      %486 = vmatprep.subr.bf16.mxu0 0
      %487 = vmatpush1.bf16.msra.mxu0 0
      %488 = vmatprep.subr.bf16.mxu0 0
      %489 = vmatpush1.bf16.msra.mxu0 0
      %490 = vmatprep.subr.bf16.mxu0 0
      %491 = vmatpush1.bf16.msra.mxu0 0
      %492 = vmatprep.subr.bf16.mxu0 0
      %493 = vmatpush1.bf16.msra.mxu0 0
      %494 = vmatprep.subr.bf16.mxu0 0
      %495 = vmatpush1.bf16.msra.mxu0 0
      %496 = vmatprep.subr.bf16.mxu0 0
      %497 = vmatpush1.bf16.msra.mxu0 0
      %498 = vmatprep.subr.bf16.mxu0 0
      %499 = vmatpush1.bf16.msra.mxu0 0
      %500 = vmatprep.subr.bf16.mxu0 0
      %501 = vmatpush1.bf16.msra.mxu0 0
      %502 = vmatprep.subr.bf16.mxu0 0
      %503 = vmatpush1.bf16.msra.mxu0 0
      %504 = vmatprep.subr.bf16.mxu0 0
      %505 = vmatpush1.bf16.msra.mxu0 0
      %506 = vmatprep.mubr.bf16.mxu0 0
      %507 = vmatmul.mubr.bf16.gmra.mrb[0].mxu0 %v431
      %v508 = vpop.f32.mrb[0].mxu0
      %v509 = vadd.f32 %v468, %v508
      %v510 = vpop.f32.mrb[0].mxu0
      %v511 = vpop.f32.mrb[0].mxu0
      %v512 = vadd.f32 %v471, %v511
      %v513 = vpop.f32.mrb[0].mxu0
      %514 = vdwg.mxu0
      %v555 = vunpack.c.l.b16 %v176
      %v556 = vunpack.c.l.b16 %v177
      %v557 = vunpack.c.l.b16 %v178
      %v558 = vunpack.c.l.b16 %v179
      %v559 = vunpack.c.l.b16 %v180
      %v560 = vunpack.c.l.b16 %v181
      %v561 = vunpack.c.l.b16 %v182
      %v562 = vunpack.c.l.b16 %v183
      %v563 = vunpack.c.l.b16 %v184
      %v564 = vunpack.c.l.b16 %v185
      %v565 = vunpack.c.l.b16 %v186
      %v566 = vunpack.c.l.b16 %v187
      %v567 = vunpack.c.l.b16 %v188
      %v568 = vunpack.c.l.b16 %v189
      %v569 = vunpack.c.l.b16 %v190
      %v570 = vunpack.c.l.b16 %v191
      %v571 = vunpack.c.l.b16 %v192
      %v572 = vunpack.c.l.b16 %v193
      %v573 = vunpack.c.l.b16 %v194
      %v574 = vunpack.c.l.b16 %v195
      %v575 = vunpack.c.l.b16 %v196
      %v576 = vunpack.c.l.b16 %v197
      %v577 = vunpack.c.l.b16 %v198
      %v578 = vunpack.c.l.b16 %v199
      %v579 = vunpack.c.l.b16 %v200
      %v580 = vunpack.c.l.b16 %v201
      %v581 = vunpack.c.l.b16 %v202
      %v582 = vunpack.c.l.b16 %v203
      %v583 = vunpack.c.l.b16 %v204
      %v584 = vunpack.c.l.b16 %v205
      %v585 = vunpack.c.l.b16 %v206
      %v586 = vunpack.c.l.b16 %v207
      %v587 = vunpack.c.l.b16 %v208
      %v588 = vunpack.c.l.b16 %v209
      %v589 = vunpack.c.l.b16 %v210
      %v590 = vunpack.c.l.b16 %v211
      %v591 = vunpack.c.l.b16 %v212
      %v592 = vunpack.c.l.b16 %v213
      %v593 = vpack.c.b16 %v556, %v555
      %v594 = vpack.c.b16 %v558, %v557
      %v595 = vpack.c.b16 %v560, %v559
      %v596 = vpack.c.b16 %v562, %v561
      %v597 = vpack.c.b16 %v564, %v563
      %v598 = vpack.c.b16 %v566, %v565
      %v599 = vpack.c.b16 %v568, %v567
      %v600 = vpack.c.b16 %v570, %v569
      %v601 = vpack.c.b16 %v572, %v571
      %v602 = vpack.c.b16 %v574, %v573
      %v603 = vpack.c.b16 %v576, %v575
      %v604 = vpack.c.b16 %v578, %v577
      %v605 = vpack.c.b16 %v580, %v579
      %v606 = vpack.c.b16 %v582, %v581
      %v607 = vpack.c.b16 %v584, %v583
      %v608 = vpack.c.b16 %v586, %v585
      %v609 = vpack.c.b16 %v588, %v587
      %v610 = vpack.c.b16 %v590, %v589
      %v611 = vpack.c.b16 %v592, %v591
      %v631 = vsel %vm429, %v272, 0
      %633 = vmatprep.subr.bf16.mxu0 0
      %634 = vmatpush1.bf16.msra.mxu0 %v593
      %635 = vmatprep.subr.bf16.mxu0 0
      %636 = vmatpush1.bf16.msra.mxu0 %v594
      %637 = vmatprep.subr.bf16.mxu0 0
      %638 = vmatpush1.bf16.msra.mxu0 %v595
      %639 = vmatprep.subr.bf16.mxu0 0
      %640 = vmatpush1.bf16.msra.mxu0 %v596
      %641 = vmatprep.subr.bf16.mxu0 0
      %642 = vmatpush1.bf16.msra.mxu0 %v597
      %643 = vmatprep.subr.bf16.mxu0 0
      %644 = vmatpush1.bf16.msra.mxu0 %v598
      %645 = vmatprep.subr.bf16.mxu0 0
      %646 = vmatpush1.bf16.msra.mxu0 %v599
      %647 = vmatprep.subr.bf16.mxu0 0
      %648 = vmatpush1.bf16.msra.mxu0 %v600
      %649 = vmatprep.subr.bf16.mxu0 0
      %650 = vmatpush1.bf16.msra.mxu0 %v601
      %651 = vmatprep.subr.bf16.mxu0 0
      %652 = vmatpush1.bf16.msra.mxu0 %v602
      %653 = vmatprep.subr.bf16.mxu0 0
      %654 = vmatpush1.bf16.msra.mxu0 %v603
      %655 = vmatprep.subr.bf16.mxu0 0
      %656 = vmatpush1.bf16.msra.mxu0 %v604
      %657 = vmatprep.subr.bf16.mxu0 0
      %658 = vmatpush1.bf16.msra.mxu0 %v605
      %659 = vmatprep.subr.bf16.mxu0 0
      %660 = vmatpush1.bf16.msra.mxu0 %v606
      %661 = vmatprep.subr.bf16.mxu0 0
      %662 = vmatpush1.bf16.msra.mxu0 %v607
      %663 = vmatprep.subr.bf16.mxu0 0
      %664 = vmatpush1.bf16.msra.mxu0 %v608
      %665 = vmatprep.mubr.bf16.mxu0 %v271
      %666 = vmatmul.mubr.bf16.gmra.mrb[0].mxu0 %v270
      %v667 = vpop.f32.mrb[0].mxu0
      %v668 = vadd.f32 %v509, %v667
      %v669 = vpop.f32.mrb[0].mxu0
      %v670 = vpop.f32.mrb[0].mxu0
      %v671 = vadd.f32 %v512, %v670
      %v672 = vpop.f32.mrb[0].mxu0
      %673 = vdwg.mxu0
      %674 = vmatprep.subr.bf16.mxu0 0
      %675 = vmatpush1.bf16.msra.mxu0 %v609
      %676 = vmatprep.subr.bf16.mxu0 0
      %677 = vmatpush1.bf16.msra.mxu0 %v610
      %678 = vmatprep.subr.bf16.mxu0 0
      %679 = vmatpush1.bf16.msra.mxu0 %v611
      %680 = vmatprep.subr.bf16.mxu0 0
      %681 = vmatpush1.bf16.msra.mxu0 0
      %682 = vmatprep.subr.bf16.mxu0 0
      %683 = vmatpush1.bf16.msra.mxu0 0
      %684 = vmatprep.subr.bf16.mxu0 0
      %685 = vmatpush1.bf16.msra.mxu0 0
      %686 = vmatprep.subr.bf16.mxu0 0
      %687 = vmatpush1.bf16.msra.mxu0 0
      %688 = vmatprep.subr.bf16.mxu0 0
      %689 = vmatpush1.bf16.msra.mxu0 0
      %690 = vmatprep.subr.bf16.mxu0 0
      %691 = vmatpush1.bf16.msra.mxu0 0
      %692 = vmatprep.subr.bf16.mxu0 0
      %693 = vmatpush1.bf16.msra.mxu0 0
      %694 = vmatprep.subr.bf16.mxu0 0
      %695 = vmatpush1.bf16.msra.mxu0 0
      %696 = vmatprep.subr.bf16.mxu0 0
      %697 = vmatpush1.bf16.msra.mxu0 0
      %698 = vmatprep.subr.bf16.mxu0 0
      %699 = vmatpush1.bf16.msra.mxu0 0
      %700 = vmatprep.subr.bf16.mxu0 0
      %701 = vmatpush1.bf16.msra.mxu0 0
      %702 = vmatprep.subr.bf16.mxu0 0
      %703 = vmatpush1.bf16.msra.mxu0 0
      %704 = vmatprep.subr.bf16.mxu0 0
      %705 = vmatpush1.bf16.msra.mxu0 0
      %706 = vmatprep.mubr.bf16.mxu0 0
      %707 = vmatmul.mubr.bf16.gmra.mrb[0].mxu0 %v631
      %v708 = vpop.f32.mrb[0].mxu0
      %v709 = vadd.f32 %v668, %v708
      %v710 = vpop.f32.mrb[0].mxu0
      %v711 = vpop.f32.mrb[0].mxu0
      %v712 = vadd.f32 %v671, %v711
      %v713 = vpop.f32.mrb[0].mxu0
      %714 = vdwg.mxu0
      %v715 = vld [vmem:[%s165] sm:$0xee]
      %v716 = vld [vmem:[%s165 + $0x8] sm:$0xe]
      %s717 = scalar_lea.vmem %s1, 304
      %v718 = vld [vmem:[%s717] sm:$0xf]
      %v719 = vld [vmem:[%s717 + $0x4] sm:$0xf]
      %v720 = vld [vmem:[%s717 + $0x8] sm:$0xf]
      %v721 = vld [vmem:[%s717 + $0xc] sm:$0xf]
      %v722 = vld [vmem:[%s717 + $0x10] sm:$0xf]
      %v723 = vld [vmem:[%s717 + $0x14] sm:$0xf]
      %v724 = vld [vmem:[%s717 + $0x18] sm:$0xf]
      %v725 = vld [vmem:[%s717 + $0x1c] sm:$0xf]
      %v726 = vld [vmem:[%s717 + $0x20] sm:$0xf]
      %v727 = vld [vmem:[%s717 + $0x24] sm:$0xf]
      %v728 = vld [vmem:[%s717 + $0x28] sm:$0xf]
      %v729 = vld [vmem:[%s717 + $0x2c] sm:$0xf]
      %v730 = vld [vmem:[%s717 + $0x30] sm:$0xf]
      %v731 = vld [vmem:[%s717 + $0x34] sm:$0xf]
      %v732 = vld [vmem:[%s717 + $0x38] sm:$0xf]
      %v733 = vld [vmem:[%s717 + $0x3c] sm:$0xf]
      %v734 = vld [vmem:[%s717 + $0x40] sm:$0xf]
      %v735 = vld [vmem:[%s717 + $0x44] sm:$0xf]
      %v736 = vld [vmem:[%s717 + $0x48] sm:$0xf]
      %v737 = vld [vmem:[%s717 + $0x4c] sm:$0xf]
      %v738 = vld [vmem:[%s717 + $0x50] sm:$0xf]
      %v739 = vld [vmem:[%s717 + $0x54] sm:$0xf]
      %v740 = vld [vmem:[%s717 + $0x58] sm:$0xf]
      %v741 = vld [vmem:[%s717 + $0x5c] sm:$0xf]
      %v742 = vld [vmem:[%s717 + $0x60] sm:$0xf]
      %v743 = vld [vmem:[%s717 + $0x64] sm:$0xf]
      %v744 = vld [vmem:[%s717 + $0x68] sm:$0xf]
      %v745 = vld [vmem:[%s717 + $0x6c] sm:$0xf]
      %v746 = vld [vmem:[%s717 + $0x70] sm:$0xf]
      %v747 = vld [vmem:[%s717 + $0x74] sm:$0xf]
      %v748 = vld [vmem:[%s717 + $0x78] sm:$0xf]
      %v749 = vld [vmem:[%s717 + $0x7c] sm:$0xf]
      %v750 = vld [vmem:[%s717 + $0x80] sm:$0xf]
      %v751 = vld [vmem:[%s717 + $0x84] sm:$0xf]
      %v752 = vld [vmem:[%s717 + $0x88] sm:$0xf]
      %v753 = vld [vmem:[%s717 + $0x8c] sm:$0xf]
      %v754 = vld [vmem:[%s717 + $0x90] sm:$0xf]
      %v755 = vld [vmem:[%s717 + $0x94] sm:$0xf]
      %v758 = vunpack.c.l.b16 %v715
      %v759 = vunpack.c.h.b16 %v715
      %v760 = vunpack.c.l.b16 %v716
      %v761 = vpack.c.b16 %v264, %v758
      %v762 = vpack.c.b16 %v265, %v759
      %v763 = vpack.c.b16 %v266, %v760
      %vm764 = vcmask 1046528
      %v765 = vrot.slane %v761, 1
      %v766 = vrot.slane %v273, 1
      %v767 = vsel %vm764, %v765, %v766
      %v768 = vrot.slane %v762, 1
      %v769 = vrot.slane %v274, 1
      %v770 = vsel %vm764, %v768, %v769
      %v771 = vrot.slane %v763, 1
      %v772 = vrot.slane %v275, 1
      %v773 = vsel %vm764, %v771, %v772
      %v814 = vunpack.c.l.b16 %v718
      %v815 = vunpack.c.l.b16 %v719
      %v816 = vunpack.c.l.b16 %v720
      %v817 = vunpack.c.l.b16 %v721
      %v818 = vunpack.c.l.b16 %v722
      %v819 = vunpack.c.l.b16 %v723
      %v820 = vunpack.c.l.b16 %v724
      %v821 = vunpack.c.l.b16 %v725
      %v822 = vunpack.c.l.b16 %v726
      %v823 = vunpack.c.l.b16 %v727
      %v824 = vunpack.c.l.b16 %v728
      %v825 = vunpack.c.l.b16 %v729
      %v826 = vunpack.c.l.b16 %v730
      %v827 = vunpack.c.l.b16 %v731
      %v828 = vunpack.c.l.b16 %v732
      %v829 = vunpack.c.l.b16 %v733
      %v830 = vunpack.c.l.b16 %v734
      %v831 = vunpack.c.l.b16 %v735
      %v832 = vunpack.c.l.b16 %v736
      %v833 = vunpack.c.l.b16 %v737
      %v834 = vunpack.c.l.b16 %v738
      %v835 = vunpack.c.l.b16 %v739
      %v836 = vunpack.c.l.b16 %v740
      %v837 = vunpack.c.l.b16 %v741
      %v838 = vunpack.c.l.b16 %v742
      %v839 = vunpack.c.l.b16 %v743
      %v840 = vunpack.c.l.b16 %v744
      %v841 = vunpack.c.l.b16 %v745
      %v842 = vunpack.c.l.b16 %v746
      %v843 = vunpack.c.l.b16 %v747
      %v844 = vunpack.c.l.b16 %v748
      %v845 = vunpack.c.l.b16 %v749
      %v846 = vunpack.c.l.b16 %v750
      %v847 = vunpack.c.l.b16 %v751
      %v848 = vunpack.c.l.b16 %v752
      %v849 = vunpack.c.l.b16 %v753
      %v850 = vunpack.c.l.b16 %v754
      %v851 = vunpack.c.l.b16 %v755
      %v852 = vpack.c.b16 %v815, %v814
      %v853 = vpack.c.b16 %v817, %v816
      %v854 = vpack.c.b16 %v819, %v818
      %v855 = vpack.c.b16 %v821, %v820
      %v856 = vpack.c.b16 %v823, %v822
      %v857 = vpack.c.b16 %v825, %v824
      %v858 = vpack.c.b16 %v827, %v826
      %v859 = vpack.c.b16 %v829, %v828
      %v860 = vpack.c.b16 %v831, %v830
      %v861 = vpack.c.b16 %v833, %v832
      %v862 = vpack.c.b16 %v835, %v834
      %v863 = vpack.c.b16 %v837, %v836
      %v864 = vpack.c.b16 %v839, %v838
      %v865 = vpack.c.b16 %v841, %v840
      %v866 = vpack.c.b16 %v843, %v842
      %v867 = vpack.c.b16 %v845, %v844
      %v868 = vpack.c.b16 %v847, %v846
      %v869 = vpack.c.b16 %v849, %v848
      %v870 = vpack.c.b16 %v851, %v850
      %v891 = vsel %vm429, %v773, 0
      %893 = vmatprep.subr.bf16.mxu0 0
      %894 = vmatpush1.bf16.msra.mxu0 %v852
      %895 = vmatprep.subr.bf16.mxu0 0
      %896 = vmatpush1.bf16.msra.mxu0 %v853
      %897 = vmatprep.subr.bf16.mxu0 0
      %898 = vmatpush1.bf16.msra.mxu0 %v854
      %899 = vmatprep.subr.bf16.mxu0 0
      %900 = vmatpush1.bf16.msra.mxu0 %v855
      %901 = vmatprep.subr.bf16.mxu0 0
      %902 = vmatpush1.bf16.msra.mxu0 %v856
      %903 = vmatprep.subr.bf16.mxu0 0
      %904 = vmatpush1.bf16.msra.mxu0 %v857
      %905 = vmatprep.subr.bf16.mxu0 0
      %906 = vmatpush1.bf16.msra.mxu0 %v858
      %907 = vmatprep.subr.bf16.mxu0 0
      %908 = vmatpush1.bf16.msra.mxu0 %v859
      %909 = vmatprep.subr.bf16.mxu0 0
      %910 = vmatpush1.bf16.msra.mxu0 %v860
      %911 = vmatprep.subr.bf16.mxu0 0
      %912 = vmatpush1.bf16.msra.mxu0 %v861
      %913 = vmatprep.subr.bf16.mxu0 0
      %914 = vmatpush1.bf16.msra.mxu0 %v862
      %915 = vmatprep.subr.bf16.mxu0 0
      %916 = vmatpush1.bf16.msra.mxu0 %v863
      %917 = vmatprep.subr.bf16.mxu0 0
      %918 = vmatpush1.bf16.msra.mxu0 %v864
      %919 = vmatprep.subr.bf16.mxu0 0
      %920 = vmatpush1.bf16.msra.mxu0 %v865
      %921 = vmatprep.subr.bf16.mxu0 0
      %922 = vmatpush1.bf16.msra.mxu0 %v866
      %923 = vmatprep.subr.bf16.mxu0 0
      %924 = vmatpush1.bf16.msra.mxu0 %v867
      %925 = vmatprep.mubr.bf16.mxu0 %v770
      %926 = vmatmul.mubr.bf16.gmra.mrb[0].mxu0 %v767
      %v927 = vpop.f32.mrb[0].mxu0
      %v928 = vadd.f32 0.0, %v927
      %v929 = vpop.f32.mrb[0].mxu0
      %v930 = vpop.f32.mrb[0].mxu0
      %v931 = vadd.f32 0.0, %v930
      %v932 = vpop.f32.mrb[0].mxu0
      %933 = vdwg.mxu0
      %934 = vmatprep.subr.bf16.mxu0 0
      %935 = vmatpush1.bf16.msra.mxu0 %v868
      %936 = vmatprep.subr.bf16.mxu0 0
      %937 = vmatpush1.bf16.msra.mxu0 %v869
      %938 = vmatprep.subr.bf16.mxu0 0
      %939 = vmatpush1.bf16.msra.mxu0 %v870
      %940 = vmatprep.subr.bf16.mxu0 0
      %941 = vmatpush1.bf16.msra.mxu0 0
      %942 = vmatprep.subr.bf16.mxu0 0
      %943 = vmatpush1.bf16.msra.mxu0 0
      %944 = vmatprep.subr.bf16.mxu0 0
      %945 = vmatpush1.bf16.msra.mxu0 0
      %946 = vmatprep.subr.bf16.mxu0 0
      %947 = vmatpush1.bf16.msra.mxu0 0
      %948 = vmatprep.subr.bf16.mxu0 0
      %949 = vmatpush1.bf16.msra.mxu0 0
      %950 = vmatprep.subr.bf16.mxu0 0
      %951 = vmatpush1.bf16.msra.mxu0 0
      %952 = vmatprep.subr.bf16.mxu0 0
      %953 = vmatpush1.bf16.msra.mxu0 0
      %954 = vmatprep.subr.bf16.mxu0 0
      %955 = vmatpush1.bf16.msra.mxu0 0
      %956 = vmatprep.subr.bf16.mxu0 0
      %957 = vmatpush1.bf16.msra.mxu0 0
      %958 = vmatprep.subr.bf16.mxu0 0
      %959 = vmatpush1.bf16.msra.mxu0 0
      %960 = vmatprep.subr.bf16.mxu0 0
      %961 = vmatpush1.bf16.msra.mxu0 0
      %962 = vmatprep.subr.bf16.mxu0 0
      %963 = vmatpush1.bf16.msra.mxu0 0
      %964 = vmatprep.subr.bf16.mxu0 0
      %965 = vmatpush1.bf16.msra.mxu0 0
      %966 = vmatprep.mubr.bf16.mxu0 0
      %967 = vmatmul.mubr.bf16.gmra.mrb[0].mxu0 %v891
      %v968 = vpop.f32.mrb[0].mxu0
      %v969 = vadd.f32 %v928, %v968
      %v970 = vpop.f32.mrb[0].mxu0
      %v971 = vpop.f32.mrb[0].mxu0
      %v972 = vadd.f32 %v931, %v971
      %v973 = vpop.f32.mrb[0].mxu0
      %974 = vdwg.mxu0
      %v975 = vadd.f32 %v709, %v969
      %v976 = vadd.f32 %v712, %v972
      %v977 = vld [vmem:[%s2] sm:$0x7]
      %v978 = vlaneseq
      %v979 = vshrl.u32 %v978, 7
      %v980 = vsub.s32 0, %v979
      %v981 = vrot.slane %v977, %v980
      %v982 = vadd.f32 %v975, %v981
      %v983 = vadd.f32 %v976, %v981
      %984 = vadd.xlane.f32.xlu0 %v982
      %v985 = vpop.xlane.xlu0 %984
      %986 = vadd.xlane.f32.xlu0 %v983
      %v987 = vpop.xlane.xlu0 %986
      %vm988 = vcmask 7168
      %v989 = vsel %vm988, %v985, 0.0
      %v990 = vsel %vm988, %v987, 0.0
      %v991 = vadd.f32 %v989, %v990
      %992 = vadd.xlane.f32.xlu0 %v991
      %v993 = vpop.xlane.xlu0 %992
      %v994 = vrot.slane %v993, 4
      %v995 = vadd.f32 %v993, %v994
      %v996 = vrot.slane %v995, 2
      %v997 = vadd.f32 %v995, %v996
      %v998 = vrot.slane %v997, 1
      %v999 = vadd.f32 %v997, %v998
      %s1000 = vtos %v999
      %s1001 = smul.f32 %s1000, 0.00048828125
      %v1002 = vstv %s1001
      %v1003 = vsub.f32 %v982, %v1002
      %v1004 = vsub.f32 %v983, %v1002
      %v1005 = vmul.f32 %v1003, %v1003
      %v1006 = vmul.f32 %v1004, %v1004
      %1007 = vadd.xlane.f32.xlu0 %v1005
      %v1008 = vpop.xlane.xlu0 %1007
      %1009 = vadd.xlane.f32.xlu0 %v1006
      %v1010 = vpop.xlane.xlu0 %1009
      %v1011 = vsel %vm988, %v1008, 0.0
      %v1012 = vsel %vm988, %v1010, 0.0
      %v1013 = vadd.f32 %v1011, %v1012
      %1014 = vadd.xlane.f32.xlu0 %v1013
      %v1015 = vpop.xlane.xlu0 %1014
      %v1016 = vrot.slane %v1015, 4
      %v1017 = vadd.f32 %v1015, %v1016
      %v1018 = vrot.slane %v1017, 2
      %v1019 = vadd.f32 %v1017, %v1018
      %v1020 = vrot.slane %v1019, 1
      %v1021 = vadd.f32 %v1019, %v1020
      %s1022 = vtos %v1021
      %s1023 = smul.f32 %s1022, 0.00048828125
      %s1024 = sadd.f32 %s1023, 1e-05
      %v1025 = vstv %s1024
      %v1026 = vrsqrt.pop %v1025
      %s1027 = vtos %v1026
      %v1028 = vstv %s1027
      %v1029 = vmul.f32 %v1028, %v977
      %v1030 = vlaneseq
      %v1031 = vshrl.u32 %v1030, 7
      %v1032 = vsub.s32 1, %v1031
      %v1033 = vrot.slane %v1029, %v1032
      %v1034 = vmul.f32 %v1003, %v1033
      %v1035 = vmul.f32 %v1004, %v1033
      %v1036 = vlaneseq
      %v1037 = vshrl.u32 %v1036, 7
      %v1038 = vsub.s32 2, %v1037
      %v1039 = vrot.slane %v977, %v1038
      %v1040 = vadd.f32 %v1034, %v1039
      %v1041 = vadd.f32 %v1035, %v1039
      %v1042 = vmax.f32 %v1040, 0.0
      %v1043 = vmax.f32 %v1041, 0.0
      %v1044 = vpack.c.bf16 %v1043, %v1042
      %v1046 = vunpack.c.l.b16 %v1044
      %v1047 = vunpack.c.h.b16 %v1044
      %v1048 = vpack.c.b16 %v1046, %v1046
      %v1049 = vpack.c.b16 %v1047, %v1047
      %1052 = vst [vmem:[%s170] sm:$0xf] %v1048
      %1053 = vst [vmem:[%s170 + $0x4] sm:$0xf] %v1049
      %p1054 = scmp.lt.s32.totalorder %s14, 1
      %s1055 = scalar_select %p1054, %s14, 1
      %s1056 = smul.addr %s1055, 2
      %s1057 = smul.addr %s1056, 4
      %s1058 = scalar_lea.vmem %s3, %s1057
      // Predicated region
      $region33: #{decoder_apply.2} parent=31 // pred_check
        %p1059 = pneg %p100
      $region34: #{decoder_apply.2} parent=31 // pred_check_branch
        %1061 = sbr.rel (%p1059) target = $region36
      $region35: #{decoder_apply.2} parent=31 // pred_region
        _
      $region36: #{decoder_apply.2} parent=31 // pred_fallthru
        _
    $region32: #{decoder_apply.2} parent=5 // pred_fallthru
      _
    %p1062 = scmp.le.s32.totalorder 2, %s9
    // Predicated region
    $region37: #{decoder_apply.2} parent=5 // pred_check
      %p1063 = pneg %p1062
    $region38: #{decoder_apply.2} parent=5 // pred_check_branch
      %1065 = sbr.rel (%p1063) target = $region40
    $region39: #{decoder_apply.2} parent=5 // pred_region
      %s1066 = ssub.s32 %s9, 2
      // Predicated region
      $region41: #{decoder_apply.2} parent=39 // pred_check
        %p1067 = pneg %p106
      $region42: #{decoder_apply.2} parent=39 // pred_check_branch
        %1069 = sbr.rel (%p1067) target = $region44
      $region43: #{decoder_apply.2} parent=39 // pred_region
        %p1070 = scmp.lt.s32.totalorder %s15, 1
        %s1071 = scalar_select %p1070, %s15, 1
        %s1072 = smul.addr %s1071, 2
        %s1073 = smul.addr %s1072, 4
        %s1074 = scalar_lea.vmem %s3, %s1073
      $region44: #{decoder_apply.2} parent=39 // pred_fallthru
        _
    $region40: #{decoder_apply.2} parent=5 // pred_fallthru
      _
  $region6: #{decoder_apply.2} parent=0 // loop_footer
    %s13 = sadd.s32 1, %s9
  $region7: #{decoder_apply.2} parent=0 // loop_footer_branch
    %8 = sbr.rel target = $region3
  $region8: #{decoder_apply.2} parent=0 // loop_exit
    _

// kernel: decoder_apply.3
$region0: #{decoder_apply.3}
  #allocation0 [shape = 'u32[]', space=smem, size = 0x4, offset = 0x4, fixed_abs, tag = 'smem constant byte address 0x4 - core index']
  #allocation1 [shape = 'u32[144,128]{1,0:T(1,128)}', space=vmem, size = 0x12000, scoped, tag = 'internal scratch']
  %s0 = inlined_call_operand.vmem [shape: bf16[2,34,280], index: 0, kind: input, shape index: {}]
  %s1 = inlined_call_operand.vmem [shape: bf16[3,280,128], index: 1, kind: input, shape index: {}]
  %s2 = inlined_call_operand.vmem [shape: f32[3,128], index: 2, kind: input, shape index: {}]
  %s3 = inlined_call_operand.vmem [shape: f32[2,32,128], index: 3, kind: output, shape index: {}]
  %s4 = sld [smem:[#allocation0]]
  $region45: #{decoder_apply.3} parent=0
    _
  %s6 = ssub.s32 1, %s4
  %s7 = scalar_select 0, %s6, %s4
  loop: start=0, step=1, limit=4
  $region2: #{decoder_apply.3} parent=0 // loop_pre_header
    _
  $region3: #{decoder_apply.3} parent=0 // loop_header
    %s9 = sphi 0, %s13
    %p10 = scmp.ge.s32.totalorder %s9, 4
    %s19 = sphi 0, %s21
    %s22 = sphi 0, %s19
    %s23 = sphi 0, %s22
    %s39 = sphi 0, %s23
    %s43 = sphi 0, %s43
    %s45 = sphi 0, %s43
    %s46 = sphi 0, %s45
    %s60 = sphi 0, %s46
    %s64 = sphi 0, %s64
    %s66 = sphi 0, %s64
    %s67 = sphi 0, %s66
    %s81 = sphi 0, %s67
    %s87 = sphi 0, %s89
    %s90 = sphi 0, %s87
    %s91 = sphi 0, %s90
    %s107 = sphi 0, %s91
  $region4: #{decoder_apply.3} parent=0 // loop_header_branch
    %12 = sbr.rel (%p10) target = $region8
  $region5: #{decoder_apply.3} parent=0 // loop_body
    %s14 = ssub.s32 %s9, 1
    %s15 = ssub.s32 %s9, 2
    %s16 = sadd.s32 %s9, 1
    %s17 = ssub.s32 %s9, %s16
    %p18 = scmp.eq.s32.totalorder %s17, 0
    %s20 = sadd.s32 %s19, 1
    %s21 = scalar_select %p18, %s19, %s20
    %p24 = pneg %p18
    %p25 = scmp.eq.s32.totalorder %s9, 1
    %p26 = por %p24, %p25
    %p27 = scmp.ne.s32.totalorder %s19, %s22
    %p28 = scmp.eq.s32.totalorder %s9, 0
    %p29 = por %p27, %p28
    %p30 = scmp.ne.s32.totalorder %s19, %s22
    %p31 = scmp.eq.s32.totalorder %s14, 1
    %p32 = por %p30, %p31
    %p33 = scmp.ne.s32.totalorder %s22, %s23
    %p34 = scmp.eq.s32.totalorder %s14, 0
    %p35 = por %p33, %p34
    %p36 = scmp.ne.s32.totalorder %s22, %s23
    %p37 = scmp.eq.s32.totalorder %s15, 1
    %p38 = por %p36, %p37
    %p40 = scmp.ne.s32.totalorder %s23, %s39
    %p41 = scmp.eq.s32.totalorder %s15, 0
    %p42 = por %p40, %p41
    %s44 = sadd.s32 %s43, 1
    %p47 = scmp.eq.s32.totalorder %s9, 1
    %p48 = scmp.ne.s32.totalorder %s43, %s45
    %p49 = scmp.eq.s32.totalorder %s9, 0
    %p50 = por %p48, %p49
    %p51 = scmp.ne.s32.totalorder %s43, %s45
    %p52 = scmp.eq.s32.totalorder %s14, 1
    %p53 = por %p51, %p52
    %p54 = scmp.ne.s32.totalorder %s45, %s46
    %p55 = scmp.eq.s32.totalorder %s14, 0
    %p56 = por %p54, %p55
    %p57 = scmp.ne.s32.totalorder %s45, %s46
    %p58 = scmp.eq.s32.totalorder %s15, 1
    %p59 = por %p57, %p58
    %p61 = scmp.ne.s32.totalorder %s46, %s60
    %p62 = scmp.eq.s32.totalorder %s15, 0
    %p63 = por %p61, %p62
    %s65 = sadd.s32 %s64, 1
    %p68 = scmp.eq.s32.totalorder %s9, 1
    %p69 = scmp.ne.s32.totalorder %s64, %s66
    %p70 = scmp.eq.s32.totalorder %s9, 0
    %p71 = por %p69, %p70
    %p72 = scmp.ne.s32.totalorder %s64, %s66
    %p73 = scmp.eq.s32.totalorder %s14, 1
    %p74 = por %p72, %p73
    %p75 = scmp.ne.s32.totalorder %s66, %s67
    %p76 = scmp.eq.s32.totalorder %s14, 0
    %p77 = por %p75, %p76
    %p78 = scmp.ne.s32.totalorder %s66, %s67
    %p79 = scmp.eq.s32.totalorder %s15, 1
    %p80 = por %p78, %p79
    %p82 = scmp.ne.s32.totalorder %s67, %s81
    %p83 = scmp.eq.s32.totalorder %s15, 0
    %p84 = por %p82, %p83
    %s85 = ssub.s32 %s9, %s16
    %p86 = scmp.eq.s32.totalorder %s85, 0
    %s88 = sadd.s32 %s87, 1
    %s89 = scalar_select %p86, %s87, %s88
    %p92 = pneg %p86
    %p93 = scmp.eq.s32.totalorder %s9, 1
    %p94 = por %p92, %p93
    %p95 = scmp.ne.s32.totalorder %s87, %s90
    %p96 = scmp.eq.s32.totalorder %s9, 0
    %p97 = por %p95, %p96
    %p98 = scmp.ne.s32.totalorder %s87, %s90
    %p99 = scmp.eq.s32.totalorder %s14, 1
    %p100 = por %p98, %p99
    %p101 = scmp.ne.s32.totalorder %s90, %s91
    %p102 = scmp.eq.s32.totalorder %s14, 0
    %p103 = por %p101, %p102
    %p104 = scmp.ne.s32.totalorder %s90, %s91
    %p105 = scmp.eq.s32.totalorder %s15, 1
    %p106 = por %p104, %p105
    %p108 = scmp.ne.s32.totalorder %s91, %s107
    %p109 = scmp.eq.s32.totalorder %s15, 0
    %p110 = por %p108, %p109
    %p111 = scmp.le.s32.totalorder 1, %s9
    %p112 = scmp.lt.s32.totalorder %s9, 3
    %p113 = pnand %p111, %p112
    %p114 = pneg %p113
    // Predicated region
    $region9: #{decoder_apply.3} parent=5 // pred_check
      _
    $region10: #{decoder_apply.3} parent=5 // pred_check_branch
      %116 = sbr.rel (%p113) target = $region12
    $region11: #{decoder_apply.3} parent=5 // pred_region
      %s117 = ssub.s32 %s9, 1
      // Predicated region
      $region13: #{decoder_apply.3} parent=11 // pred_check
        %p118 = pneg %p56
      $region14: #{decoder_apply.3} parent=11 // pred_check_branch
        %120 = sbr.rel (%p118) target = $region16
      $region15: #{decoder_apply.3} parent=11 // pred_region
        _
      $region16: #{decoder_apply.3} parent=11 // pred_fallthru
        _
      // Predicated region
      $region17: #{decoder_apply.3} parent=11 // pred_check
        %p121 = pneg %p77
      $region18: #{decoder_apply.3} parent=11 // pred_check_branch
        %123 = sbr.rel (%p121) target = $region20
      $region19: #{decoder_apply.3} parent=11 // pred_region
        _
      $region20: #{decoder_apply.3} parent=11 // pred_fallthru
        _
    $region12: #{decoder_apply.3} parent=5 // pred_fallthru
      _
    %p124 = scmp.lt.s32.totalorder %s9, 2
    // Predicated region
    $region21: #{decoder_apply.3} parent=5 // pred_check
      %p125 = pneg %p124
    $region22: #{decoder_apply.3} parent=5 // pred_check_branch
      %127 = sbr.rel (%p125) target = $region24
    $region23: #{decoder_apply.3} parent=5 // pred_region
      // Predicated region
      $region25: #{decoder_apply.3} parent=23 // pred_check
        %p128 = pneg %p29
      $region26: #{decoder_apply.3} parent=23 // pred_check_branch
        %130 = sbr.rel (%p128) target = $region28
      $region27: #{decoder_apply.3} parent=23 // pred_region
        %p131 = scmp.lt.s32.totalorder %s9, 1
        %s132 = scalar_select %p131, %s9, 1
        %s133 = smul.addr %s132, 15
        %s134 = smul.addr %s133, 4
        %s135 = scalar_lea.vmem %s0, %s134
      $region28: #{decoder_apply.3} parent=23 // pred_fallthru
        _
    $region24: #{decoder_apply.3} parent=5 // pred_fallthru
      _
    %p136 = scmp.le.s32.totalorder 1, %s9
    %p137 = scmp.lt.s32.totalorder %s9, 3
    %p138 = pnand %p136, %p137
    %p139 = pneg %p138
    // Predicated region
    $region29: #{decoder_apply.3} parent=5 // pred_check
      _
    $region30: #{decoder_apply.3} parent=5 // pred_check_branch
      %141 = sbr.rel (%p138) target = $region32
    $region31: #{decoder_apply.3} parent=5 // pred_region
      %s142 = ssub.s32 %s9, 1
      %p143 = scmp.lt.s32.totalorder %s14, 1
      %s144 = scalar_select %p143, %s14, 1
      %s145 = smul.addr %s144, 15
      %s146 = smul.addr %s145, 4
      %s147 = scalar_lea.vmem %s0, %s146
      %p148 = pneg %p35
      %p149 = pneg %p32
      %p150 = pneg %p56
      %p151 = pneg %p53
      %p152 = pneg %p77
      %p153 = pneg %p74
      %p154 = pneg %p103
      %p155 = pneg %p100
      %p156 = scmp.lt.s32.totalorder %s14, 1
      %s157 = scalar_select %p156, %s14, 1
      %s158 = smul.addr %s157, 4
      %s159 = smul.addr %s158, 8
      %s160 = scalar_lea.vmem %s3, %s159
      %p161 = scmp.lt.s32.totalorder %s14, 1
      %s162 = scalar_select %p161, %s14, 1
      %s163 = smul.addr %s162, 15
      %s164 = smul.addr %s163, 4
      %s165 = scalar_lea.vmem %s0, %s164
      %p166 = scmp.lt.s32.totalorder %s14, 1
      %s167 = scalar_select %p166, %s14, 1
      %s168 = smul.addr %s167, 4
      %s169 = smul.addr %s168, 8
      %s170 = scalar_lea.vmem %s3, %s169
      %v172 = vld [vmem:[%s165] sm:$0xff]
      %v173 = vld [vmem:[%s165 + $0x8] sm:$0xf]
      %v174 = vld [vmem:[%s165 + $0xc] sm:$0xff]
      %v175 = vld [vmem:[%s165 + $0x14] sm:$0xf]
      %v176 = vld [vmem:[%s165 + $0x18] sm:$0xff]
      %v177 = vld [vmem:[%s165 + $0x20] sm:$0xf]
      %v178 = vld [vmem:[%s165 + $0x24] sm:$0xff]
      %v179 = vld [vmem:[%s165 + $0x2c] sm:$0xf]
      %v180 = vld [vmem:[%s1] sm:$0xf]
      %v181 = vld [vmem:[%s1 + $0x4] sm:$0xf]
      %v182 = vld [vmem:[%s1 + $0x8] sm:$0xf]
      %v183 = vld [vmem:[%s1 + $0xc] sm:$0xf]
      %v184 = vld [vmem:[%s1 + $0x10] sm:$0xf]
      %v185 = vld [vmem:[%s1 + $0x14] sm:$0xf]
      %v186 = vld [vmem:[%s1 + $0x18] sm:$0xf]
      %v187 = vld [vmem:[%s1 + $0x1c] sm:$0xf]
      %v188 = vld [vmem:[%s1 + $0x20] sm:$0xf]
      %v189 = vld [vmem:[%s1 + $0x24] sm:$0xf]
      %v190 = vld [vmem:[%s1 + $0x28] sm:$0xf]
      %v191 = vld [vmem:[%s1 + $0x2c] sm:$0xf]
      %v192 = vld [vmem:[%s1 + $0x30] sm:$0xf]
      %v193 = vld [vmem:[%s1 + $0x34] sm:$0xf]
      %v194 = vld [vmem:[%s1 + $0x38] sm:$0xf]
      %v195 = vld [vmem:[%s1 + $0x3c] sm:$0xf]
      %v196 = vld [vmem:[%s1 + $0x40] sm:$0xf]
      %v197 = vld [vmem:[%s1 + $0x44] sm:$0xf]
      %v198 = vld [vmem:[%s1 + $0x48] sm:$0xf]
      %v199 = vld [vmem:[%s1 + $0x4c] sm:$0xf]
      %v200 = vld [vmem:[%s1 + $0x50] sm:$0xf]
      %v201 = vld [vmem:[%s1 + $0x54] sm:$0xf]
      %v202 = vld [vmem:[%s1 + $0x58] sm:$0xf]
      %v203 = vld [vmem:[%s1 + $0x5c] sm:$0xf]
      %v204 = vld [vmem:[%s1 + $0x60] sm:$0xf]
      %v205 = vld [vmem:[%s1 + $0x64] sm:$0xf]
      %v206 = vld [vmem:[%s1 + $0x68] sm:$0xf]
      %v207 = vld [vmem:[%s1 + $0x6c] sm:$0xf]
      %v208 = vld [vmem:[%s1 + $0x70] sm:$0xf]
      %v209 = vld [vmem:[%s1 + $0x74] sm:$0xf]
      %v210 = vld [vmem:[%s1 + $0x78] sm:$0xf]
      %v211 = vld [vmem:[%s1 + $0x7c] sm:$0xf]
      %v212 = vld [vmem:[%s1 + $0x80] sm:$0xf]
      %v213 = vld [vmem:[%s1 + $0x84] sm:$0xf]
      %v214 = vld [vmem:[%s1 + $0x88] sm:$0xf]
      %v215 = vld [vmem:[%s165 + $0x30] sm:$0x11]
      %v216 = vld [vmem:[%s165 + $0x38] sm:$0x1]
      %s217 = scalar_lea.vmem %s1, 140
      %v218 = vld [vmem:[%s217] sm:$0xf]
      %v219 = vld [vmem:[%s217 + $0x4] sm:$0xf]
      %v220 = vld [vmem:[%s217 + $0x8] sm:$0xf]
      %v221 = vld [vmem:[%s217 + $0xc] sm:$0xf]
      %v222 = vld [vmem:[%s217 + $0x10] sm:$0xf]
      %v223 = vld [vmem:[%s217 + $0x14] sm:$0xf]
      %v224 = vld [vmem:[%s217 + $0x18] sm:$0xf]
      %v225 = vld [vmem:[%s217 + $0x1c] sm:$0xf]
      %v226 = vld [vmem:[%s217 + $0x20] sm:$0xf]
      %v227 = vld [vmem:[%s217 + $0x24] sm:$0xf]
      %v228 = vld [vmem:[%s217 + $0x28] sm:$0xf]
      %v229 = vld [vmem:[%s217 + $0x2c] sm:$0xf]
      %v230 = vld [vmem:[%s217 + $0x30] sm:$0xf]
      %v231 = vld [vmem:[%s217 + $0x34] sm:$0xf]
      %v232 = vld [vmem:[%s217 + $0x38] sm:$0xf]
      %v233 = vld [vmem:[%s217 + $0x3c] sm:$0xf]
      %v234 = vld [vmem:[%s217 + $0x40] sm:$0xf]
      %v235 = vld [vmem:[%s217 + $0x44] sm:$0xf]
      %v236 = vld [vmem:[%s217 + $0x48] sm:$0xf]
      %v237 = vld [vmem:[%s217 + $0x4c] sm:$0xf]
      %v238 = vld [vmem:[%s217 + $0x50] sm:$0xf]
      %v239 = vld [vmem:[%s217 + $0x54] sm:$0xf]
      %v240 = vld [vmem:[%s217 + $0x58] sm:$0xf]
      %v241 = vld [vmem:[%s217 + $0x5c] sm:$0xf]
      %v242 = vld [vmem:[%s217 + $0x60] sm:$0xf]
      %v243 = vld [vmem:[%s217 + $0x64] sm:$0xf]
      %v244 = vld [vmem:[%s217 + $0x68] sm:$0xf]
      %v245 = vld [vmem:[%s217 + $0x6c] sm:$0xf]
      %v246 = vld [vmem:[%s217 + $0x70] sm:$0xf]
      %v247 = vld [vmem:[%s217 + $0x74] sm:$0xf]
      %v248 = vld [vmem:[%s217 + $0x78] sm:$0xf]
      %v249 = vld [vmem:[%s217 + $0x7c] sm:$0xf]
      %v250 = vld [vmem:[%s217 + $0x80] sm:$0xf]
      %v251 = vld [vmem:[%s217 + $0x84] sm:$0xf]
      %v252 = vld [vmem:[%s217 + $0x88] sm:$0xf]
      %v263 = vunpack.c.l.b16 %v172
      %v264 = vunpack.c.h.b16 %v172
      %v265 = vunpack.c.l.b16 %v173
      %v266 = vunpack.c.l.b16 %v174
      %v267 = vunpack.c.h.b16 %v174
      %v268 = vunpack.c.l.b16 %v175
      %v269 = vunpack.c.l.b16 %v176
      %v270 = vunpack.c.h.b16 %v176
      %v271 = vunpack.c.l.b16 %v177
      %v272 = vunpack.c.l.b16 %v178
      %v273 = vunpack.c.h.b16 %v178
      %v274 = vunpack.c.l.b16 %v179
      %v275 = vunpack.c.l.b16 %v215
      %v276 = vunpack.c.h.b16 %v215
      %v277 = vunpack.c.l.b16 %v216
      %v278 = vpack.c.b16 %v266, %v263
      %v279 = vpack.c.b16 %v267, %v264
      %v280 = vpack.c.b16 %v268, %v265
      %v281 = vpack.c.b16 %v272, %v269
      %v282 = vpack.c.b16 %v273, %v270
      %v283 = vpack.c.b16 %v274, %v271
      %v284 = vpack.c.b16 %v275, %v275
      %v285 = vpack.c.b16 %v276, %v276
      %v286 = vpack.c.b16 %v277, %v277
      %vm287 = vsmask.f32 7424
      %v289 = vshrl.u32 %v278, 16
      %v291 = vshll.u32 %v278, 16
      %v293 = vrot.slane %v291, 1
      %v294 = vor.u32 %v289, %v293
      %v296 = vshll.u32 %v281, 16
      %v298 = vrot.slane %v296, 1
      %v299 = vsel %vm287, %v294, %v298
      %v301 = vshrl.u32 %v279, 16
      %v303 = vshll.u32 %v279, 16
      %v305 = vrot.slane %v303, 1
      %v306 = vor.u32 %v301, %v305
      %v308 = vshll.u32 %v282, 16
      %v310 = vrot.slane %v308, 1
      %v311 = vsel %vm287, %v306, %v310
      %v313 = vshrl.u32 %v280, 16
      %v315 = vshll.u32 %v280, 16
      %v317 = vrot.slane %v315, 1
      %v318 = vor.u32 %v313, %v317
      %v320 = vshll.u32 %v283, 16
      %v322 = vrot.slane %v320, 1
      %v323 = vsel %vm287, %v318, %v322
      %v324 = vshrl.u32 %v281, 16
      %v326 = vor.u32 %v324, %v298
      %v328 = vshll.u32 %v284, 16
      %v330 = vrot.slane %v328, 1
      %v331 = vsel %vm287, %v326, %v330
      %v332 = vshrl.u32 %v282, 16
      %v334 = vor.u32 %v332, %v310
      %v336 = vshll.u32 %v285, 16
      %v338 = vrot.slane %v336, 1
      %v339 = vsel %vm287, %v334, %v338
      %v340 = vshrl.u32 %v283, 16
      %v342 = vor.u32 %v340, %v322
      %v344 = vshll.u32 %v286, 16
      %v346 = vrot.slane %v344, 1
      %v347 = vsel %vm287, %v342, %v346
      %v387 = vunpack.c.l.b16 %v218
      %v388 = vunpack.c.l.b16 %v219
      %v389 = vunpack.c.l.b16 %v220
      %v390 = vunpack.c.l.b16 %v221
      %v391 = vunpack.c.l.b16 %v222
      %v392 = vunpack.c.l.b16 %v223
      %v393 = vunpack.c.l.b16 %v224
      %v394 = vunpack.c.l.b16 %v225
      %v395 = vunpack.c.l.b16 %v226
      %v396 = vunpack.c.l.b16 %v227
      %v397 = vunpack.c.l.b16 %v228
      %v398 = vunpack.c.l.b16 %v229
      %v399 = vunpack.c.l.b16 %v230
      %v400 = vunpack.c.l.b16 %v231
      %v401 = vunpack.c.l.b16 %v232
      %v402 = vunpack.c.l.b16 %v233
      %v403 = vunpack.c.l.b16 %v234
      %v404 = vunpack.c.l.b16 %v235
      %v405 = vunpack.c.l.b16 %v236
      %v406 = vunpack.c.l.b16 %v237
      %v407 = vunpack.c.l.b16 %v238
      %v408 = vunpack.c.l.b16 %v239
      %v409 = vunpack.c.l.b16 %v240
      %v410 = vunpack.c.l.b16 %v241
      %v411 = vunpack.c.l.b16 %v242
      %v412 = vunpack.c.l.b16 %v243
      %v413 = vunpack.c.l.b16 %v244
      %v414 = vunpack.c.l.b16 %v245
      %v415 = vunpack.c.l.b16 %v246
      %v416 = vunpack.c.l.b16 %v247
      %v417 = vunpack.c.l.b16 %v248
      %v418 = vunpack.c.l.b16 %v249
      %v419 = vunpack.c.l.b16 %v250
      %v420 = vunpack.c.l.b16 %v251
      %v421 = vunpack.c.l.b16 %v252
      %v422 = vpack.c.b16 %v388, %v387
      %v423 = vpack.c.b16 %v390, %v389
      %v424 = vpack.c.b16 %v392, %v391
      %v425 = vpack.c.b16 %v394, %v393
      %v426 = vpack.c.b16 %v396, %v395
      %v427 = vpack.c.b16 %v398, %v397
      %v428 = vpack.c.b16 %v400, %v399
      %v429 = vpack.c.b16 %v402, %v401
      %v430 = vpack.c.b16 %v404, %v403
      %v431 = vpack.c.b16 %v406, %v405
      %v432 = vpack.c.b16 %v408, %v407
      %v433 = vpack.c.b16 %v410, %v409
      %v434 = vpack.c.b16 %v412, %v411
      %v435 = vpack.c.b16 %v414, %v413
      %v436 = vpack.c.b16 %v416, %v415
      %v437 = vpack.c.b16 %v418, %v417
      %v438 = vpack.c.b16 %v420, %v419
      %v439 = vpack.c.b16 %v421, %v421
      %vm457 = vcmask 195584
      %v459 = vsel %vm457, %v323, 0
      %v462 = vsel %vm457, %v347, 0
      %vm464 = vcmask 1043456
      %v466 = vsel %vm464, %v439, 0
      %468 = vmatprep.subr.bf16.mxu0 0
      %469 = vmatpush1.bf16.msra.mxu0 %v422
      %470 = vmatprep.subr.bf16.mxu0 0
      %471 = vmatpush1.bf16.msra.mxu0 %v423
      %472 = vmatprep.subr.bf16.mxu0 0
      %473 = vmatpush1.bf16.msra.mxu0 %v424
      %474 = vmatprep.subr.bf16.mxu0 0
      %475 = vmatpush1.bf16.msra.mxu0 %v425
      %476 = vmatprep.subr.bf16.mxu0 0
      %477 = vmatpush1.bf16.msra.mxu0 %v426
      %478 = vmatprep.subr.bf16.mxu0 0
      %479 = vmatpush1.bf16.msra.mxu0 %v427
      %480 = vmatprep.subr.bf16.mxu0 0
      %481 = vmatpush1.bf16.msra.mxu0 %v428
      %482 = vmatprep.subr.bf16.mxu0 0
      %483 = vmatpush1.bf16.msra.mxu0 %v429
      %484 = vmatprep.subr.bf16.mxu0 0
      %485 = vmatpush1.bf16.msra.mxu0 %v430
      %486 = vmatprep.subr.bf16.mxu0 0
      %487 = vmatpush1.bf16.msra.mxu0 %v431
      %488 = vmatprep.subr.bf16.mxu0 0
      %489 = vmatpush1.bf16.msra.mxu0 %v432
      %490 = vmatprep.subr.bf16.mxu0 0
      %491 = vmatpush1.bf16.msra.mxu0 %v433
      %492 = vmatprep.subr.bf16.mxu0 0
      %493 = vmatpush1.bf16.msra.mxu0 %v434
      %494 = vmatprep.subr.bf16.mxu0 0
      %495 = vmatpush1.bf16.msra.mxu0 %v435
      %496 = vmatprep.subr.bf16.mxu0 0
      %497 = vmatpush1.bf16.msra.mxu0 %v436
      %498 = vmatprep.subr.bf16.mxu0 0
      %499 = vmatpush1.bf16.msra.mxu0 %v437
      %500 = vmatprep.mubr.bf16.mxu0 %v311
      %501 = vmatmul.mubr.bf16.gmra.mrb[0].mxu0 %v299
      %v502 = vpop.f32.mrb[0].mxu0
      %v503 = vadd.f32 0.0, %v502
      %v504 = vpop.f32.mrb[0].mxu0
      %v505 = vpop.f32.mrb[0].mxu0
      %v506 = vadd.f32 0.0, %v505
      %v507 = vpop.f32.mrb[0].mxu0
      %508 = vmatprep.mubr.bf16.mxu0 %v339
      %509 = vmatmul.mubr.bf16.gmra.mrb[0].mxu0 %v331
      %v510 = vpop.f32.mrb[0].mxu0
      %v511 = vadd.f32 0.0, %v510
      %v512 = vpop.f32.mrb[0].mxu0
      %v513 = vpop.f32.mrb[0].mxu0
      %v514 = vadd.f32 0.0, %v513
      %v515 = vpop.f32.mrb[0].mxu0
      %516 = vdwg.mxu0
      %517 = vmatprep.subr.bf16.mxu0 0
      %518 = vmatpush1.bf16.msra.mxu0 %v438
      %519 = vmatprep.subr.bf16.mxu0 0
      %520 = vmatpush1.bf16.msra.mxu0 %v466
      %521 = vmatprep.subr.bf16.mxu0 0
      %522 = vmatpush1.bf16.msra.mxu0 0
      %523 = vmatprep.subr.bf16.mxu0 0
      %524 = vmatpush1.bf16.msra.mxu0 0
      %525 = vmatprep.subr.bf16.mxu0 0
      %526 = vmatpush1.bf16.msra.mxu0 0
      %527 = vmatprep.subr.bf16.mxu0 0
      %528 = vmatpush1.bf16.msra.mxu0 0
      %529 = vmatprep.subr.bf16.mxu0 0
      %530 = vmatpush1.bf16.msra.mxu0 0
      %531 = vmatprep.subr.bf16.mxu0 0
      %532 = vmatpush1.bf16.msra.mxu0 0
      %533 = vmatprep.subr.bf16.mxu0 0
      %534 = vmatpush1.bf16.msra.mxu0 0
      %535 = vmatprep.subr.bf16.mxu0 0
      %536 = vmatpush1.bf16.msra.mxu0 0
      %537 = vmatprep.subr.bf16.mxu0 0
      %538 = vmatpush1.bf16.msra.mxu0 0
      %539 = vmatprep.subr.bf16.mxu0 0
      %540 = vmatpush1.bf16.msra.mxu0 0
      %541 = vmatprep.subr.bf16.mxu0 0
      %542 = vmatpush1.bf16.msra.mxu0 0
      %543 = vmatprep.subr.bf16.mxu0 0
      %544 = vmatpush1.bf16.msra.mxu0 0
      %545 = vmatprep.subr.bf16.mxu0 0
      %546 = vmatpush1.bf16.msra.mxu0 0
      %547 = vmatprep.subr.bf16.mxu0 0
      %548 = vmatpush1.bf16.msra.mxu0 0
      %549 = vmatprep.mubr.bf16.mxu0 0
      %550 = vmatmul.mubr.bf16.gmra.mrb[0].mxu0 %v459
      %v551 = vpop.f32.mrb[0].mxu0
      %v552 = vadd.f32 %v503, %v551
      %v553 = vpop.f32.mrb[0].mxu0
      %v554 = vpop.f32.mrb[0].mxu0
      %v555 = vadd.f32 %v506, %v554
      %v556 = vpop.f32.mrb[0].mxu0
      %557 = vmatprep.mubr.bf16.mxu0 0
      %558 = vmatmul.mubr.bf16.gmra.mrb[0].mxu0 %v462
      %v559 = vpop.f32.mrb[0].mxu0
      %v560 = vadd.f32 %v511, %v559
      %v561 = vpop.f32.mrb[0].mxu0
      %v562 = vpop.f32.mrb[0].mxu0
      %v563 = vadd.f32 %v514, %v562
      %v564 = vpop.f32.mrb[0].mxu0
      %565 = vdwg.mxu0
      %v605 = vunpack.c.l.b16 %v180
      %v606 = vunpack.c.l.b16 %v181
      %v607 = vunpack.c.l.b16 %v182
      %v608 = vunpack.c.l.b16 %v183
      %v609 = vunpack.c.l.b16 %v184
      %v610 = vunpack.c.l.b16 %v185
      %v611 = vunpack.c.l.b16 %v186
      %v612 = vunpack.c.l.b16 %v187
      %v613 = vunpack.c.l.b16 %v188
      %v614 = vunpack.c.l.b16 %v189
      %v615 = vunpack.c.l.b16 %v190
      %v616 = vunpack.c.l.b16 %v191
      %v617 = vunpack.c.l.b16 %v192
      %v618 = vunpack.c.l.b16 %v193
      %v619 = vunpack.c.l.b16 %v194
      %v620 = vunpack.c.l.b16 %v195
      %v621 = vunpack.c.l.b16 %v196
      %v622 = vunpack.c.l.b16 %v197
      %v623 = vunpack.c.l.b16 %v198
      %v624 = vunpack.c.l.b16 %v199
      %v625 = vunpack.c.l.b16 %v200
      %v626 = vunpack.c.l.b16 %v201
      %v627 = vunpack.c.l.b16 %v202
      %v628 = vunpack.c.l.b16 %v203
      %v629 = vunpack.c.l.b16 %v204
      %v630 = vunpack.c.l.b16 %v205
      %v631 = vunpack.c.l.b16 %v206
      %v632 = vunpack.c.l.b16 %v207
      %v633 = vunpack.c.l.b16 %v208
      %v634 = vunpack.c.l.b16 %v209
      %v635 = vunpack.c.l.b16 %v210
      %v636 = vunpack.c.l.b16 %v211
      %v637 = vunpack.c.l.b16 %v212
      %v638 = vunpack.c.l.b16 %v213
      %v639 = vunpack.c.l.b16 %v214
      %v640 = vpack.c.b16 %v606, %v605
      %v641 = vpack.c.b16 %v608, %v607
      %v642 = vpack.c.b16 %v610, %v609
      %v643 = vpack.c.b16 %v612, %v611
      %v644 = vpack.c.b16 %v614, %v613
      %v645 = vpack.c.b16 %v616, %v615
      %v646 = vpack.c.b16 %v618, %v617
      %v647 = vpack.c.b16 %v620, %v619
      %v648 = vpack.c.b16 %v622, %v621
      %v649 = vpack.c.b16 %v624, %v623
      %v650 = vpack.c.b16 %v626, %v625
      %v651 = vpack.c.b16 %v628, %v627
      %v652 = vpack.c.b16 %v630, %v629
      %v653 = vpack.c.b16 %v632, %v631
      %v654 = vpack.c.b16 %v634, %v633
      %v655 = vpack.c.b16 %v636, %v635
      %v656 = vpack.c.b16 %v638, %v637
      %v657 = vpack.c.b16 %v639, %v639
      %v675 = vsel %vm457, %v280, 0
      %v677 = vsel %vm457, %v283, 0
      %v680 = vsel %vm464, %v657, 0
      %682 = vmatprep.subr.bf16.mxu0 0
      %683 = vmatpush1.bf16.msra.mxu0 %v640
      %684 = vmatprep.subr.bf16.mxu0 0
      %685 = vmatpush1.bf16.msra.mxu0 %v641
      %686 = vmatprep.subr.bf16.mxu0 0
      %687 = vmatpush1.bf16.msra.mxu0 %v642
      %688 = vmatprep.subr.bf16.mxu0 0
      %689 = vmatpush1.bf16.msra.mxu0 %v643
      %690 = vmatprep.subr.bf16.mxu0 0
      %691 = vmatpush1.bf16.msra.mxu0 %v644
      %692 = vmatprep.subr.bf16.mxu0 0
      %693 = vmatpush1.bf16.msra.mxu0 %v645
      %694 = vmatprep.subr.bf16.mxu0 0
      %695 = vmatpush1.bf16.msra.mxu0 %v646
      %696 = vmatprep.subr.bf16.mxu0 0
      %697 = vmatpush1.bf16.msra.mxu0 %v647
      %698 = vmatprep.subr.bf16.mxu0 0
      %699 = vmatpush1.bf16.msra.mxu0 %v648
      %700 = vmatprep.subr.bf16.mxu0 0
      %701 = vmatpush1.bf16.msra.mxu0 %v649
      %702 = vmatprep.subr.bf16.mxu0 0
      %703 = vmatpush1.bf16.msra.mxu0 %v650
      %704 = vmatprep.subr.bf16.mxu0 0
      %705 = vmatpush1.bf16.msra.mxu0 %v651
      %706 = vmatprep.subr.bf16.mxu0 0
      %707 = vmatpush1.bf16.msra.mxu0 %v652
      %708 = vmatprep.subr.bf16.mxu0 0
      %709 = vmatpush1.bf16.msra.mxu0 %v653
      %710 = vmatprep.subr.bf16.mxu0 0
      %711 = vmatpush1.bf16.msra.mxu0 %v654
      %712 = vmatprep.subr.bf16.mxu0 0
      %713 = vmatpush1.bf16.msra.mxu0 %v655
      %714 = vmatprep.mubr.bf16.mxu0 %v279
      %715 = vmatmul.mubr.bf16.gmra.mrb[0].mxu0 %v278
      %v716 = vpop.f32.mrb[0].mxu0
      %v717 = vadd.f32 %v552, %v716
      %v718 = vpop.f32.mrb[0].mxu0
      %v719 = vpop.f32.mrb[0].mxu0
      %v720 = vadd.f32 %v555, %v719
      %v721 = vpop.f32.mrb[0].mxu0
      %722 = vmatprep.mubr.bf16.mxu0 %v282
      %723 = vmatmul.mubr.bf16.gmra.mrb[0].mxu0 %v281
      %v724 = vpop.f32.mrb[0].mxu0
      %v725 = vadd.f32 %v560, %v724
      %v726 = vpop.f32.mrb[0].mxu0
      %v727 = vpop.f32.mrb[0].mxu0
      %v728 = vadd.f32 %v563, %v727
      %v729 = vpop.f32.mrb[0].mxu0
      %730 = vdwg.mxu0
      %731 = vmatprep.subr.bf16.mxu0 0
      %732 = vmatpush1.bf16.msra.mxu0 %v656
      %733 = vmatprep.subr.bf16.mxu0 0
      %734 = vmatpush1.bf16.msra.mxu0 %v680
      %735 = vmatprep.subr.bf16.mxu0 0
      %736 = vmatpush1.bf16.msra.mxu0 0
      %737 = vmatprep.subr.bf16.mxu0 0
      %738 = vmatpush1.bf16.msra.mxu0 0
      %739 = vmatprep.subr.bf16.mxu0 0
      %740 = vmatpush1.bf16.msra.mxu0 0
      %741 = vmatprep.subr.bf16.mxu0 0
      %742 = vmatpush1.bf16.msra.mxu0 0
      %743 = vmatprep.subr.bf16.mxu0 0
      %744 = vmatpush1.bf16.msra.mxu0 0
      %745 = vmatprep.subr.bf16.mxu0 0
      %746 = vmatpush1.bf16.msra.mxu0 0
      %747 = vmatprep.subr.bf16.mxu0 0
      %748 = vmatpush1.bf16.msra.mxu0 0
      %749 = vmatprep.subr.bf16.mxu0 0
      %750 = vmatpush1.bf16.msra.mxu0 0
      %751 = vmatprep.subr.bf16.mxu0 0
      %752 = vmatpush1.bf16.msra.mxu0 0
      %753 = vmatprep.subr.bf16.mxu0 0
      %754 = vmatpush1.bf16.msra.mxu0 0
      %755 = vmatprep.subr.bf16.mxu0 0
      %756 = vmatpush1.bf16.msra.mxu0 0
      %757 = vmatprep.subr.bf16.mxu0 0
      %758 = vmatpush1.bf16.msra.mxu0 0
      %759 = vmatprep.subr.bf16.mxu0 0
      %760 = vmatpush1.bf16.msra.mxu0 0
      %761 = vmatprep.subr.bf16.mxu0 0
      %762 = vmatpush1.bf16.msra.mxu0 0
      %763 = vmatprep.mubr.bf16.mxu0 0
      %764 = vmatmul.mubr.bf16.gmra.mrb[0].mxu0 %v675
      %v765 = vpop.f32.mrb[0].mxu0
      %v766 = vadd.f32 %v717, %v765
      %v767 = vpop.f32.mrb[0].mxu0
      %v768 = vpop.f32.mrb[0].mxu0
      %v769 = vadd.f32 %v720, %v768
      %v770 = vpop.f32.mrb[0].mxu0
      %771 = vmatprep.mubr.bf16.mxu0 0
      %772 = vmatmul.mubr.bf16.gmra.mrb[0].mxu0 %v677
      %v773 = vpop.f32.mrb[0].mxu0
      %v774 = vadd.f32 %v725, %v773
      %v775 = vpop.f32.mrb[0].mxu0
      %v776 = vpop.f32.mrb[0].mxu0
      %v777 = vadd.f32 %v728, %v776
      %v778 = vpop.f32.mrb[0].mxu0
      %779 = vdwg.mxu0
      %v780 = vld [vmem:[%s165] sm:$0xee]
      %v781 = vld [vmem:[%s165 + $0x8] sm:$0xe]
      %s782 = scalar_lea.vmem %s1, 280
      %v783 = vld [vmem:[%s782] sm:$0xf]
      %v784 = vld [vmem:[%s782 + $0x4] sm:$0xf]
      %v785 = vld [vmem:[%s782 + $0x8] sm:$0xf]
      %v786 = vld [vmem:[%s782 + $0xc] sm:$0xf]
      %v787 = vld [vmem:[%s782 + $0x10] sm:$0xf]
      %v788 = vld [vmem:[%s782 + $0x14] sm:$0xf]
      %v789 = vld [vmem:[%s782 + $0x18] sm:$0xf]
      %v790 = vld [vmem:[%s782 + $0x1c] sm:$0xf]
      %v791 = vld [vmem:[%s782 + $0x20] sm:$0xf]
      %v792 = vld [vmem:[%s782 + $0x24] sm:$0xf]
      %v793 = vld [vmem:[%s782 + $0x28] sm:$0xf]
      %v794 = vld [vmem:[%s782 + $0x2c] sm:$0xf]
      %v795 = vld [vmem:[%s782 + $0x30] sm:$0xf]
      %v796 = vld [vmem:[%s782 + $0x34] sm:$0xf]
      %v797 = vld [vmem:[%s782 + $0x38] sm:$0xf]
      %v798 = vld [vmem:[%s782 + $0x3c] sm:$0xf]
      %v799 = vld [vmem:[%s782 + $0x40] sm:$0xf]
      %v800 = vld [vmem:[%s782 + $0x44] sm:$0xf]
      %v801 = vld [vmem:[%s782 + $0x48] sm:$0xf]
      %v802 = vld [vmem:[%s782 + $0x4c] sm:$0xf]
      %v803 = vld [vmem:[%s782 + $0x50] sm:$0xf]
      %v804 = vld [vmem:[%s782 + $0x54] sm:$0xf]
      %v805 = vld [vmem:[%s782 + $0x58] sm:$0xf]
      %v806 = vld [vmem:[%s782 + $0x5c] sm:$0xf]
      %v807 = vld [vmem:[%s782 + $0x60] sm:$0xf]
      %v808 = vld [vmem:[%s782 + $0x64] sm:$0xf]
      %v809 = vld [vmem:[%s782 + $0x68] sm:$0xf]
      %v810 = vld [vmem:[%s782 + $0x6c] sm:$0xf]
      %v811 = vld [vmem:[%s782 + $0x70] sm:$0xf]
      %v812 = vld [vmem:[%s782 + $0x74] sm:$0xf]
      %v813 = vld [vmem:[%s782 + $0x78] sm:$0xf]
      %v814 = vld [vmem:[%s782 + $0x7c] sm:$0xf]
      %v815 = vld [vmem:[%s782 + $0x80] sm:$0xf]
      %v816 = vld [vmem:[%s782 + $0x84] sm:$0xf]
      %v817 = vld [vmem:[%s782 + $0x88] sm:$0xf]
      %v820 = vunpack.c.l.b16 %v780
      %v821 = vunpack.c.h.b16 %v780
      %v822 = vunpack.c.l.b16 %v781
      %v823 = vpack.c.b16 %v266, %v820
      %v824 = vpack.c.b16 %v267, %v821
      %v825 = vpack.c.b16 %v268, %v822
      %vm826 = vcmask 1046528
      %v827 = vrot.slane %v823, 1
      %v828 = vrot.slane %v281, 1
      %v829 = vsel %vm826, %v827, %v828
      %v830 = vrot.slane %v824, 1
      %v831 = vrot.slane %v282, 1
      %v832 = vsel %vm826, %v830, %v831
      %v833 = vrot.slane %v825, 1
      %v834 = vrot.slane %v283, 1
      %v835 = vsel %vm826, %v833, %v834
      %v836 = vrot.slane %v284, 1
      %v837 = vsel %vm826, %v828, %v836
      %v838 = vrot.slane %v285, 1
      %v839 = vsel %vm826, %v831, %v838
      %v840 = vrot.slane %v286, 1
      %v841 = vsel %vm826, %v834, %v840
      %v881 = vunpack.c.l.b16 %v783
      %v882 = vunpack.c.l.b16 %v784
      %v883 = vunpack.c.l.b16 %v785
      %v884 = vunpack.c.l.b16 %v786
      %v885 = vunpack.c.l.b16 %v787
      %v886 = vunpack.c.l.b16 %v788
      %v887 = vunpack.c.l.b16 %v789
      %v888 = vunpack.c.l.b16 %v790
      %v889 = vunpack.c.l.b16 %v791
      %v890 = vunpack.c.l.b16 %v792
      %v891 = vunpack.c.l.b16 %v793
      %v892 = vunpack.c.l.b16 %v794
      %v893 = vunpack.c.l.b16 %v795
      %v894 = vunpack.c.l.b16 %v796
      %v895 = vunpack.c.l.b16 %v797
      %v896 = vunpack.c.l.b16 %v798
      %v897 = vunpack.c.l.b16 %v799
      %v898 = vunpack.c.l.b16 %v800
      %v899 = vunpack.c.l.b16 %v801
      %v900 = vunpack.c.l.b16 %v802
      %v901 = vunpack.c.l.b16 %v803
      %v902 = vunpack.c.l.b16 %v804
      %v903 = vunpack.c.l.b16 %v805
      %v904 = vunpack.c.l.b16 %v806
      %v905 = vunpack.c.l.b16 %v807
      %v906 = vunpack.c.l.b16 %v808
      %v907 = vunpack.c.l.b16 %v809
      %v908 = vunpack.c.l.b16 %v810
      %v909 = vunpack.c.l.b16 %v811
      %v910 = vunpack.c.l.b16 %v812
      %v911 = vunpack.c.l.b16 %v813
      %v912 = vunpack.c.l.b16 %v814
      %v913 = vunpack.c.l.b16 %v815
      %v914 = vunpack.c.l.b16 %v816
      %v915 = vunpack.c.l.b16 %v817
      %v916 = vpack.c.b16 %v882, %v881
      %v917 = vpack.c.b16 %v884, %v883
      %v918 = vpack.c.b16 %v886, %v885
      %v919 = vpack.c.b16 %v888, %v887
      %v920 = vpack.c.b16 %v890, %v889
      %v921 = vpack.c.b16 %v892, %v891
      %v922 = vpack.c.b16 %v894, %v893
      %v923 = vpack.c.b16 %v896, %v895
      %v924 = vpack.c.b16 %v898, %v897
      %v925 = vpack.c.b16 %v900, %v899
      %v926 = vpack.c.b16 %v902, %v901
      %v927 = vpack.c.b16 %v904, %v903
      %v928 = vpack.c.b16 %v906, %v905
      %v929 = vpack.c.b16 %v908, %v907
      %v930 = vpack.c.b16 %v910, %v909
      %v931 = vpack.c.b16 %v912, %v911
      %v932 = vpack.c.b16 %v914, %v913
      %v933 = vpack.c.b16 %v915, %v915
      %v952 = vsel %vm457, %v835, 0
      %v955 = vsel %vm457, %v841, 0
      %v958 = vsel %vm464, %v933, 0
      %960 = vmatprep.subr.bf16.mxu0 0
      %961 = vmatpush1.bf16.msra.mxu0 %v916
      %962 = vmatprep.subr.bf16.mxu0 0
      %963 = vmatpush1.bf16.msra.mxu0 %v917
      %964 = vmatprep.subr.bf16.mxu0 0
      %965 = vmatpush1.bf16.msra.mxu0 %v918
      %966 = vmatprep.subr.bf16.mxu0 0
      %967 = vmatpush1.bf16.msra.mxu0 %v919
      %968 = vmatprep.subr.bf16.mxu0 0
      %969 = vmatpush1.bf16.msra.mxu0 %v920
      %970 = vmatprep.subr.bf16.mxu0 0
      %971 = vmatpush1.bf16.msra.mxu0 %v921
      %972 = vmatprep.subr.bf16.mxu0 0
      %973 = vmatpush1.bf16.msra.mxu0 %v922
      %974 = vmatprep.subr.bf16.mxu0 0
      %975 = vmatpush1.bf16.msra.mxu0 %v923
      %976 = vmatprep.subr.bf16.mxu0 0
      %977 = vmatpush1.bf16.msra.mxu0 %v924
      %978 = vmatprep.subr.bf16.mxu0 0
      %979 = vmatpush1.bf16.msra.mxu0 %v925
      %980 = vmatprep.subr.bf16.mxu0 0
      %981 = vmatpush1.bf16.msra.mxu0 %v926
      %982 = vmatprep.subr.bf16.mxu0 0
      %983 = vmatpush1.bf16.msra.mxu0 %v927
      %984 = vmatprep.subr.bf16.mxu0 0
      %985 = vmatpush1.bf16.msra.mxu0 %v928
      %986 = vmatprep.subr.bf16.mxu0 0
      %987 = vmatpush1.bf16.msra.mxu0 %v929
      %988 = vmatprep.subr.bf16.mxu0 0
      %989 = vmatpush1.bf16.msra.mxu0 %v930
      %990 = vmatprep.subr.bf16.mxu0 0
      %991 = vmatpush1.bf16.msra.mxu0 %v931
      %992 = vmatprep.mubr.bf16.mxu0 %v832
      %993 = vmatmul.mubr.bf16.gmra.mrb[0].mxu0 %v829
      %v994 = vpop.f32.mrb[0].mxu0
      %v995 = vadd.f32 0.0, %v994
      %v996 = vpop.f32.mrb[0].mxu0
      %v997 = vpop.f32.mrb[0].mxu0
      %v998 = vadd.f32 0.0, %v997
      %v999 = vpop.f32.mrb[0].mxu0
      %1000 = vmatprep.mubr.bf16.mxu0 %v839
      %1001 = vmatmul.mubr.bf16.gmra.mrb[0].mxu0 %v837
      %v1002 = vpop.f32.mrb[0].mxu0
      %v1003 = vadd.f32 0.0, %v1002
      %v1004 = vpop.f32.mrb[0].mxu0
      %v1005 = vpop.f32.mrb[0].mxu0
      %v1006 = vadd.f32 0.0, %v1005
      %v1007 = vpop.f32.mrb[0].mxu0
      %1008 = vdwg.mxu0
      %1009 = vmatprep.subr.bf16.mxu0 0
      %1010 = vmatpush1.bf16.msra.mxu0 %v932
      %1011 = vmatprep.subr.bf16.mxu0 0
      %1012 = vmatpush1.bf16.msra.mxu0 %v958
      %1013 = vmatprep.subr.bf16.mxu0 0
      %1014 = vmatpush1.bf16.msra.mxu0 0
      %1015 = vmatprep.subr.bf16.mxu0 0
      %1016 = vmatpush1.bf16.msra.mxu0 0
      %1017 = vmatprep.subr.bf16.mxu0 0
      %1018 = vmatpush1.bf16.msra.mxu0 0
      %1019 = vmatprep.subr.bf16.mxu0 0
      %1020 = vmatpush1.bf16.msra.mxu0 0
      %1021 = vmatprep.subr.bf16.mxu0 0
      %1022 = vmatpush1.bf16.msra.mxu0 0
      %1023 = vmatprep.subr.bf16.mxu0 0
      %1024 = vmatpush1.bf16.msra.mxu0 0
      %1025 = vmatprep.subr.bf16.mxu0 0
      %1026 = vmatpush1.bf16.msra.mxu0 0
      %1027 = vmatprep.subr.bf16.mxu0 0
      %1028 = vmatpush1.bf16.msra.mxu0 0
      %1029 = vmatprep.subr.bf16.mxu0 0
      %1030 = vmatpush1.bf16.msra.mxu0 0
      %1031 = vmatprep.subr.bf16.mxu0 0
      %1032 = vmatpush1.bf16.msra.mxu0 0
      %1033 = vmatprep.subr.bf16.mxu0 0
      %1034 = vmatpush1.bf16.msra.mxu0 0
      %1035 = vmatprep.subr.bf16.mxu0 0
      %1036 = vmatpush1.bf16.msra.mxu0 0
      %1037 = vmatprep.subr.bf16.mxu0 0
      %1038 = vmatpush1.bf16.msra.mxu0 0
      %1039 = vmatprep.subr.bf16.mxu0 0
      %1040 = vmatpush1.bf16.msra.mxu0 0
      %1041 = vmatprep.mubr.bf16.mxu0 0
      %1042 = vmatmul.mubr.bf16.gmra.mrb[0].mxu0 %v952
      %v1043 = vpop.f32.mrb[0].mxu0
      %v1044 = vadd.f32 %v995, %v1043
      %v1045 = vpop.f32.mrb[0].mxu0
      %v1046 = vpop.f32.mrb[0].mxu0
      %v1047 = vadd.f32 %v998, %v1046
      %v1048 = vpop.f32.mrb[0].mxu0
      %1049 = vmatprep.mubr.bf16.mxu0 0
      %1050 = vmatmul.mubr.bf16.gmra.mrb[0].mxu0 %v955
      %v1051 = vpop.f32.mrb[0].mxu0
      %v1052 = vadd.f32 %v1003, %v1051
      %v1053 = vpop.f32.mrb[0].mxu0
      %v1054 = vpop.f32.mrb[0].mxu0
      %v1055 = vadd.f32 %v1006, %v1054
      %v1056 = vpop.f32.mrb[0].mxu0
      %1057 = vdwg.mxu0
      %v1058 = vadd.f32 %v766, %v1044
      %v1059 = vadd.f32 %v769, %v1047
      %v1060 = vadd.f32 %v774, %v1052
      %v1061 = vadd.f32 %v777, %v1055
      %v1062 = vld [vmem:[%s2] sm:$0x7]
      %v1063 = vlaneseq
      %v1064 = vshrl.u32 %v1063, 7
      %v1065 = vsub.s32 0, %v1064
      %v1066 = vrot.slane %v1062, %v1065
      %v1067 = vadd.f32 %v1058, %v1066
      %v1068 = vadd.f32 %v1059, %v1066
      %v1069 = vadd.f32 %v1060, %v1066
      %v1070 = vadd.f32 %v1061, %v1066
      %1071 = vadd.xlane.f32.xlu0 %v1067
      %v1072 = vpop.xlane.xlu0 %1071
      %1073 = vadd.xlane.f32.xlu0 %v1068
      %v1074 = vpop.xlane.xlu0 %1073
      %1075 = vadd.xlane.f32.xlu0 %v1069
      %v1076 = vpop.xlane.xlu0 %1075
      %1077 = vadd.xlane.f32.xlu0 %v1070
      %v1078 = vpop.xlane.xlu0 %1077
      %vm1079 = vcmask 7168
      %v1080 = vsel %vm1079, %v1072, 0.0
      %v1081 = vsel %vm1079, %v1074, 0.0
      %v1082 = vadd.f32 %v1080, %v1081
      %v1083 = vsel %vm1079, %v1076, 0.0
      %v1084 = vadd.f32 %v1082, %v1083
      %v1085 = vsel %vm1079, %v1078, 0.0
      %v1086 = vadd.f32 %v1084, %v1085
      %1087 = vadd.xlane.f32.xlu0 %v1086
      %v1088 = vpop.xlane.xlu0 %1087
      %v1089 = vrot.slane %v1088, 4
      %v1090 = vadd.f32 %v1088, %v1089
      %v1091 = vrot.slane %v1090, 2
      %v1092 = vadd.f32 %v1090, %v1091
      %v1093 = vrot.slane %v1092, 1
      %v1094 = vadd.f32 %v1092, %v1093
      %s1095 = vtos %v1094
      %s1096 = smul.f32 %s1095, 0.00024414063
      %v1097 = vstv %s1096
      %v1098 = vsub.f32 %v1067, %v1097
      %v1099 = vsub.f32 %v1068, %v1097
      %v1100 = vsub.f32 %v1069, %v1097
      %v1101 = vsub.f32 %v1070, %v1097
      %v1102 = vmul.f32 %v1098, %v1098
      %v1103 = vmul.f32 %v1099, %v1099
      %v1104 = vmul.f32 %v1100, %v1100
      %v1105 = vmul.f32 %v1101, %v1101
      %1106 = vadd.xlane.f32.xlu0 %v1102
      %v1107 = vpop.xlane.xlu0 %1106
      %1108 = vadd.xlane.f32.xlu0 %v1103
      %v1109 = vpop.xlane.xlu0 %1108
      %1110 = vadd.xlane.f32.xlu0 %v1104
      %v1111 = vpop.xlane.xlu0 %1110
      %1112 = vadd.xlane.f32.xlu0 %v1105
      %v1113 = vpop.xlane.xlu0 %1112
      %v1114 = vsel %vm1079, %v1107, 0.0
      %v1115 = vsel %vm1079, %v1109, 0.0
      %v1116 = vadd.f32 %v1114, %v1115
      %v1117 = vsel %vm1079, %v1111, 0.0
      %v1118 = vadd.f32 %v1116, %v1117
      %v1119 = vsel %vm1079, %v1113, 0.0
      %v1120 = vadd.f32 %v1118, %v1119
      %1121 = vadd.xlane.f32.xlu0 %v1120
      %v1122 = vpop.xlane.xlu0 %1121
      %v1123 = vrot.slane %v1122, 4
      %v1124 = vadd.f32 %v1122, %v1123
      %v1125 = vrot.slane %v1124, 2
      %v1126 = vadd.f32 %v1124, %v1125
      %v1127 = vrot.slane %v1126, 1
      %v1128 = vadd.f32 %v1126, %v1127
      %s1129 = vtos %v1128
      %s1130 = smul.f32 %s1129, 0.00024414063
      %s1131 = sadd.f32 %s1130, 1e-05
      %v1132 = vstv %s1131
      %v1133 = vrsqrt.pop %v1132
      %s1134 = vtos %v1133
      %v1135 = vstv %s1134
      %v1136 = vmul.f32 %v1135, %v1062
      %v1137 = vlaneseq
      %v1138 = vshrl.u32 %v1137, 7
      %v1139 = vsub.s32 1, %v1138
      %v1140 = vrot.slane %v1136, %v1139
      %v1141 = vmul.f32 %v1098, %v1140
      %v1142 = vmul.f32 %v1099, %v1140
      %v1143 = vmul.f32 %v1100, %v1140
      %v1144 = vmul.f32 %v1101, %v1140
      %v1145 = vlaneseq
      %v1146 = vshrl.u32 %v1145, 7
      %v1147 = vsub.s32 2, %v1146
      %v1148 = vrot.slane %v1062, %v1147
      %v1149 = vadd.f32 %v1141, %v1148
      %v1150 = vadd.f32 %v1142, %v1148
      %v1151 = vadd.f32 %v1143, %v1148
      %v1152 = vadd.f32 %v1144, %v1148
      %v1153 = vmax.f32 %v1149, 0.0
      %v1154 = vmax.f32 %v1150, 0.0
      %v1155 = vmax.f32 %v1151, 0.0
      %v1156 = vmax.f32 %v1152, 0.0
      %1157 = vst [vmem:[%s170] sm:$0xff] %v1153
      %1158 = vst [vmem:[%s170 + $0x8] sm:$0xff] %v1154
      %1159 = vst [vmem:[%s170 + $0x10] sm:$0xff] %v1155
      %1160 = vst [vmem:[%s170 + $0x18] sm:$0xff] %v1156
      %p1161 = scmp.lt.s32.totalorder %s14, 1
      %s1162 = scalar_select %p1161, %s14, 1
      %s1163 = smul.addr %s1162, 4
      %s1164 = smul.addr %s1163, 8
      %s1165 = scalar_lea.vmem %s3, %s1164
      // Predicated region
      $region33: #{decoder_apply.3} parent=31 // pred_check
        %p1166 = pneg %p100
      $region34: #{decoder_apply.3} parent=31 // pred_check_branch
        %1168 = sbr.rel (%p1166) target = $region36
      $region35: #{decoder_apply.3} parent=31 // pred_region
        _
      $region36: #{decoder_apply.3} parent=31 // pred_fallthru
        _
    $region32: #{decoder_apply.3} parent=5 // pred_fallthru
      _
    %p1169 = scmp.le.s32.totalorder 2, %s9
    // Predicated region
    $region37: #{decoder_apply.3} parent=5 // pred_check
      %p1170 = pneg %p1169
    $region38: #{decoder_apply.3} parent=5 // pred_check_branch
      %1172 = sbr.rel (%p1170) target = $region40
    $region39: #{decoder_apply.3} parent=5 // pred_region
      %s1173 = ssub.s32 %s9, 2
      // Predicated region
      $region41: #{decoder_apply.3} parent=39 // pred_check
        %p1174 = pneg %p106
      $region42: #{decoder_apply.3} parent=39 // pred_check_branch
        %1176 = sbr.rel (%p1174) target = $region44
      $region43: #{decoder_apply.3} parent=39 // pred_region
        %p1177 = scmp.lt.s32.totalorder %s15, 1
        %s1178 = scalar_select %p1177, %s15, 1
        %s1179 = smul.addr %s1178, 4
        %s1180 = smul.addr %s1179, 8
        %s1181 = scalar_lea.vmem %s3, %s1180
      $region44: #{decoder_apply.3} parent=39 // pred_fallthru
        _
    $region40: #{decoder_apply.3} parent=5 // pred_fallthru
      _
  $region6: #{decoder_apply.3} parent=0 // loop_footer
    %s13 = sadd.s32 1, %s9
  $region7: #{decoder_apply.3} parent=0 // loop_footer_branch
    %8 = sbr.rel target = $region3
  $region8: #{decoder_apply.3} parent=0 // loop_exit
    _

</llo_original>
